<compile_context>
chip_gen: v5e
topology: v5e:2x2
jax: 0.10.0
libtpu: 0.0.40
codegen_flags: <defaults>
</compile_context>

<pallas_src>
import functools

import jax
import jax.numpy as jnp
from jax import lax
from jax.experimental import pallas as pl
from jax.experimental.pallas import tpu as pltpu

_GROUP = 8  # word-embedding rows that share one DMA semaphore


def _embeddings_kernel(ids_ref,       # SMEM (B*S,) int32     (scalar prefetch)
                       tt_ref,        # VMEM (TB, 1) int32    token-type ids
                       word_hbm_ref,  # HBM  (V, Hp)          word table (pl.ANY)
                       type_tab_ref,  # VMEM (T, Hp)          token-type table
                       pos_ref,       # VMEM (P, Hp)          full position table
                       gamma_ref,     # VMEM (1, Hp)
                       beta_ref,      # VMEM (1, Hp)
                       out_ref,       # VMEM (TB, Hp)
                       wbuf,          # scratch VMEM (2, TB, Hp) gathered rows
                       sems,          # scratch DMA sems (2, TB // _GROUP)
                       *, eps, hidden):
    b = pl.program_id(0)
    sb = pl.program_id(1)
    n_sb = pl.num_programs(1)
    tb, h_pad = out_ref.shape
    n_groups = tb // _GROUP
    slot = sb % 2
    base = (b * n_sb + sb) * tb          # flat token index of this block

    def issue_gather(tok_base, dst_slot):
        dst = wbuf.at[dst_slot]

        @pl.loop(0, n_groups)
        def _(g):
            row0 = g * _GROUP
            for r in range(_GROUP):      # static unroll: back-to-back pushes
                wid = ids_ref[tok_base + row0 + r]
                pltpu.make_async_copy(
                    word_hbm_ref.at[pl.ds(wid, 1), :],
                    dst.at[pl.ds(row0 + r, 1), :],
                    sems.at[dst_slot, g],
                ).start()

    # 1) Prime at the first seq-block of this batch row, then prefetch the
    #    NEXT block's word rows into the other slot (cross-step overlap).
    @pl.when(sb == 0)
    def _prime():
        issue_gather(base, slot)

    @pl.when(sb + 1 < n_sb)
    def _prefetch():
        issue_gather(base + tb, 1 - slot)

    # 2) Position + token-type embeddings on the VPU while the DMAs fly.
    f32 = jnp.float32
    s0 = pl.multiple_of(sb * tb, 8)
    acc = pos_ref[pl.ds(s0, tb), :].astype(f32)           # (tb, h_pad)
    tts = tt_ref[...]                                      # (tb, 1) int32
    n_types = type_tab_ref.shape[0]
    if n_types == 2:
        r0 = type_tab_ref[0, :].astype(f32)[None, :]
        r1 = type_tab_ref[1, :].astype(f32)[None, :]
        acc = acc + r0 + jnp.where(tts == 1, r1 - r0, 0.0)
    else:
        for t in range(n_types):
            row = type_tab_ref[t, :].astype(f32)[None, :]
            acc = acc + jnp.where(tts == t, row, 0.0)

    # 3) Wait for this block's gathered word rows.  One wait per 8-row group:
    #    the (GROUP, Hp) descriptor's byte count equals the sum of the 8 row
    #    DMAs that signalled this semaphore (same dtype / row width by
    #    construction), so a single wait covers the whole group.
    @pl.loop(0, n_groups)
    def _wait(g):
        pltpu.make_async_copy(
            word_hbm_ref.at[pl.ds(0, _GROUP), :],
            wbuf.at[slot].at[pl.ds(g * _GROUP, _GROUP), :],
            sems.at[slot, g],
        ).wait()

    x = acc + wbuf[slot].astype(f32)                       # (tb, h_pad)

    # 4) Fused LayerNorm: two-pass stats over the TRUE hidden dim (padded
    #    lanes of x are exactly zero, so plain lane sums are already correct).
    inv_h = 1.0 / hidden
    mean = jnp.sum(x, axis=-1, keepdims=True) * inv_h
    d = x - mean
    if h_pad != hidden:
        lane = lax.broadcasted_iota(jnp.int32, x.shape, 1)
        d = jnp.where(lane < hidden, d, 0.0)               # keep pad lanes at 0
    var = jnp.sum(d * d, axis=-1, keepdims=True) * inv_h
    y = d * (lax.rsqrt(var + eps) * gamma_ref[...]) + beta_ref[...]

    # Dropout is identity in eval mode; hidden_mask=None assumed.
    out_ref[...] = y.astype(out_ref.dtype)


def sparse_bert_embeddings(input_ids, word_tab, type_tab, pos_tab, gamma, beta,
                           token_type_ids=None, *, eps=1e-12, token_block=256,
                           out_dtype=None):
    """input_ids / token_type_ids: (B, S) int32.  Positions follow the module's
    registered arange buffer (position_ids=None path of the PyTorch module)."""
    B, S = input_ids.shape
    V, H = word_tab.shape
    P = pos_tab.shape[0]
    assert S % 8 == 0, "sequence length must be a multiple of 8"
    assert P >= S, "position table too small for sequence length"

    if token_type_ids is None:
        token_type_ids = jnp.zeros((B, S), jnp.int32)
    if out_dtype is None:
        out_dtype = word_tab.dtype       # pass jnp.bfloat16 to halve writeback

    # Pad hidden dim to a lane-dense multiple of 128 (padded lanes stay zero
    # everywhere and are stripped off after the kernel).
    Hp = ((H + 127) // 128) * 128
    if Hp != H:
        padw = ((0, 0), (0, Hp - H))
        word_tab = jnp.pad(word_tab, padw)
        pos_tab = jnp.pad(pos_tab, padw)
        type_tab = jnp.pad(type_tab, padw)
        gamma = jnp.pad(gamma, (0, Hp - H))
        beta = jnp.pad(beta, (0, Hp - H))

    # Largest multiple of 8 that divides S and is <= token_block.
    seq_block = max(8, (min(token_block, S) // 8) * 8)
    while S % seq_block:
        seq_block -= 8
    n_sb = S // seq_block
    n_groups = seq_block // _GROUP
    N = B * S

    ids = input_ids.reshape(-1).astype(jnp.int32)          # 1-D scalar prefetch
    tt2 = token_type_ids.reshape(N, 1).astype(jnp.int32)
    gamma2 = gamma.reshape(1, Hp)
    beta2 = beta.reshape(1, Hp)

    grid_spec = pltpu.PrefetchScalarGridSpec(
        num_scalar_prefetch=1,
        grid=(B, n_sb),
        in_specs=[
            # token-type ids for this block, (TB, 1) in VMEM
            pl.BlockSpec((seq_block, 1), lambda b, s, ids: (b * n_sb + s, 0)),
            # word table stays in HBM; gathered row-by-row via DMA
            pl.BlockSpec(memory_space=pl.ANY),
            # tiny token-type table, fully VMEM resident
            pl.BlockSpec(type_tab.shape, lambda b, s, ids: (0, 0)),
            # full position table, VMEM resident (constant index => no re-DMA)
            pl.BlockSpec(pos_tab.shape, lambda b, s, ids: (0, 0)),
            pl.BlockSpec((1, Hp), lambda b, s, ids: (0, 0)),   # gamma
            pl.BlockSpec((1, Hp), lambda b, s, ids: (0, 0)),   # beta
        ],
        out_specs=pl.BlockSpec((seq_block, Hp),
                               lambda b, s, ids: (b * n_sb + s, 0)),
        scratch_shapes=[
            pltpu.VMEM((2, seq_block, Hp), word_tab.dtype),    # double-buffered
            pltpu.SemaphoreType.DMA((2, n_groups)),            # per-group sems
        ],
    )

    out = pl.pallas_call(
        functools.partial(_embeddings_kernel, eps=eps, hidden=H),
        out_shape=jax.ShapeDtypeStruct((N, Hp), out_dtype),
        grid_spec=grid_spec,
        compiler_params=pltpu.CompilerParams(
            # batch axis parallel (megacore-shardable); seq-block axis
            # arbitrary so the cross-step gather prefetch carry stays
            # sequential per core.
            dimension_semantics=("parallel", "arbitrary"),
            vmem_limit_bytes=32 * 1024 * 1024),
    )(ids, tt2, word_tab, type_tab, pos_tab, gamma2, beta2)

    if Hp != H:
        out = out[:, :H]
    return out.reshape(B, S, H)


def _reference(input_ids, token_type_ids, word_tab, type_tab, pos_tab,
               gamma, beta, eps=1e-12):
    B, S = input_ids.shape
    pos_ids = jnp.broadcast_to(jnp.arange(S, dtype=jnp.int32)[None, :], (B, S))
    x = (jnp.take(word_tab, input_ids, axis=0)
         + jnp.take(type_tab, token_type_ids, axis=0)
         + jnp.take(pos_tab, pos_ids, axis=0))
    mean = jnp.mean(x, axis=-1, keepdims=True)
    var = jnp.mean((x - mean) ** 2, axis=-1, keepdims=True)
    return (x - mean) * lax.rsqrt(var + eps) * gamma + beta


if __name__ == "__main__":
    # Small synthetic config (mirrors SparseBertEmbeddings.__init__ shapes).
    vocab_size = 64
    hidden_size = 32
    max_position_embeddings = 16
    type_vocab_size = 2
    pad_token_id = 0
    layer_norm_eps = 1e-12
    batch, seq_len = 2, 8

    key = jax.random.PRNGKey(0)
    k_w, k_p, k_t, k_ids, k_tt = jax.random.split(key, 5)

    word_tab = 0.02 * jax.random.normal(k_w, (vocab_size, hidden_size), jnp.float32)
    word_tab = word_tab.at[pad_token_id].set(0.0)   # padding_idx row zeroed
    pos_tab = 0.02 * jax.random.normal(k_p, (max_position_embeddings, hidden_size),
                                       jnp.float32)
    type_tab = 0.02 * jax.random.normal(k_t, (type_vocab_size, hidden_size),
                                        jnp.float32)
    gamma = jnp.ones((hidden_size,), jnp.float32)   # nn.LayerNorm defaults
    beta = jnp.zeros((hidden_size,), jnp.float32)

    input_ids = jax.random.randint(k_ids, (batch, seq_len), 0, vocab_size, jnp.int32)
    token_type_ids = jax.random.randint(k_tt, (batch, seq_len), 0, type_vocab_size,
                                        jnp.int32)

    out = sparse_bert_embeddings(input_ids, word_tab, type_tab, pos_tab,
                                 gamma, beta, token_type_ids=token_type_ids,
                                 eps=layer_norm_eps)
    out = jax.block_until_ready(out)

    ref = _reference(input_ids, token_type_ids, word_tab, type_tab, pos_tab,
                     gamma, beta, eps=layer_norm_eps)
    assert out.shape == (batch, seq_len, hidden_size)
    assert jnp.allclose(out, ref, atol=1e-5, rtol=1e-5), "mismatch vs reference"

    print("KERNEL_OK")
</pallas_src>

<mosaic_0001>
module attributes {stable_mosaic.version = 11 : i64} {
  func.func @_embeddings_kernel(%arg0: i32, %arg1: i32, %arg2: memref<16xi32, #tpu.memory_space<smem>>, %arg3: memref<8x1xi32, #tpu.memory_space<vmem>>, %arg4: memref<64x128xf32, #tpu.memory_space<any>>, %arg5: memref<2x128xf32, #tpu.memory_space<vmem>>, %arg6: memref<16x128xf32, #tpu.memory_space<vmem>>, %arg7: memref<1x128xf32, #tpu.memory_space<vmem>>, %arg8: memref<1x128xf32, #tpu.memory_space<vmem>>, %arg9: memref<8x128xf32, #tpu.memory_space<vmem>>, %arg10: memref<2x8x128xf32, #tpu.memory_space<vmem>>, %arg11: memref<2x1x!tpu.dma_semaphore, #tpu.memory_space<semaphore_mem>>) attributes {dimension_semantics = [#tpu.dimension_semantics<parallel>, #tpu.dimension_semantics<arbitrary>], iteration_bounds = array<i64: 2, 1>, scalar_prefetch = 1 : i64, scratch_operands = 2 : i64, tpu.core_type = #tpu.core_type<tc>, window_params = [{transform_indices = @transform_0, window_bounds = array<i64: 8, 1>}, {}, {pipeline_mode = #tpu.pipeline_mode<synchronous>, transform_indices = @transform_2, window_bounds = array<i64: 2, 128>}, {pipeline_mode = #tpu.pipeline_mode<synchronous>, transform_indices = @transform_3, window_bounds = array<i64: 16, 128>}, {pipeline_mode = #tpu.pipeline_mode<synchronous>, transform_indices = @transform_4, window_bounds = array<i64: 1, 128>}, {pipeline_mode = #tpu.pipeline_mode<synchronous>, transform_indices = @transform_5, window_bounds = array<i64: 1, 128>}, {transform_indices = @transform_6, window_bounds = array<i64: 8, 128>}]} {
    %c2_i32 = arith.constant 2 : i32
    %c0_i32 = arith.constant 0 : i32
    %0 = arith.cmpi eq, %c2_i32, %c0_i32 : i32
    %c1_i32 = arith.constant 1 : i32
    %1 = arith.select %0, %c1_i32, %c2_i32 : i32
    %2 = arith.remsi %arg1, %1 : i32
    %c0_i32_0 = arith.constant 0 : i32
    %3 = arith.cmpi ne, %2, %c0_i32_0 : i32
    %c0_i32_1 = arith.constant 0 : i32
    %4 = arith.cmpi slt, %2, %c0_i32_1 : i32
    %c0_i32_2 = arith.constant 0 : i32
    %5 = arith.cmpi slt, %1, %c0_i32_2 : i32
    %6 = arith.xori %4, %5 : i1
    %7 = arith.andi %6, %3 : i1
    %8 = arith.addi %2, %1 : i32
    %9 = arith.select %7, %8, %2 : i32
    %c1_i32_3 = arith.constant 1 : i32
    %10 = arith.muli %arg0, %c1_i32_3 : i32
    %11 = arith.addi %10, %arg1 : i32
    %c8_i32 = arith.constant 8 : i32
    %12 = arith.muli %11, %c8_i32 : i32
    %c0_i32_4 = arith.constant 0 : i32
    %13 = arith.cmpi eq, %arg1, %c0_i32_4 : i32
    %14 = arith.extui %13 : i1 to i32
    %c0_i32_5 = arith.constant 0 : i32
    %15 = arith.cmpi ne, %14, %c0_i32_5 : i32
    scf.if %15 {
      %c0_i32_40 = arith.constant 0 : i32
      %c1_i32_41 = arith.constant 1 : i32
      %84 = arith.muli %c0_i32_40, %c1_i32_41 : i32
      %c0_i32_42 = arith.constant 0 : i32
      %85 = arith.addi %c0_i32_42, %84 : i32
      %c8_i32_43 = arith.constant 8 : i32
      %86 = arith.muli %85, %c8_i32_43 : i32
      %87 = arith.addi %12, %86 : i32
      %c0_i32_44 = arith.constant 0 : i32
      %88 = arith.addi %87, %c0_i32_44 : i32
      %89 = arith.index_cast %88 : i32 to index
      %90 = memref.load %arg2[%89] : memref<16xi32, #tpu.memory_space<smem>>
      %c0_i32_45 = arith.constant 0 : i32
      %91 = arith.addi %86, %c0_i32_45 : i32
      %c0_i32_46 = arith.constant 0 : i32
      %92 = tpu.memref_slice %arg4[%90, %c0_i32_46] : memref<64x128xf32, #tpu.memory_space<any>> -> memref<1x128xf32, #tpu.memory_space<any>>
      %c0_i32_47 = arith.constant 0 : i32
      %c0_i32_48 = arith.constant 0 : i32
      %93 = tpu.memref_slice %arg10[%9, %c0_i32_47, %c0_i32_48] : memref<2x8x128xf32, #tpu.memory_space<vmem>> -> memref<1x8x128xf32, #tpu.memory_space<vmem>>
      %94 = tpu.memref_squeeze %93 : memref<1x8x128xf32, #tpu.memory_space<vmem>> -> memref<8x128xf32, #tpu.memory_space<vmem>>
      %c0_i32_49 = arith.constant 0 : i32
      %95 = tpu.memref_slice %94[%91, %c0_i32_49] : memref<8x128xf32, #tpu.memory_space<vmem>> -> memref<1x128xf32, #tpu.memory_space<vmem>>
      %96 = tpu.memref_slice %arg11[%9, %85] : memref<2x1x!tpu.dma_semaphore, #tpu.memory_space<semaphore_mem>> -> memref<1x1x!tpu.dma_semaphore, #tpu.memory_space<semaphore_mem>>
      %97 = tpu.memref_squeeze %96 : memref<1x1x!tpu.dma_semaphore, #tpu.memory_space<semaphore_mem>> -> memref<!tpu.dma_semaphore, #tpu.memory_space<semaphore_mem>>
      tpu.enqueue_dma source(%92 : memref<1x128xf32, #tpu.memory_space<any>>) target(%95 : memref<1x128xf32, #tpu.memory_space<vmem>>) target_semaphore(%97 : memref<!tpu.dma_semaphore, #tpu.memory_space<semaphore_mem>>)
      %98 = arith.addi %12, %86 : i32
      %c1_i32_50 = arith.constant 1 : i32
      %99 = arith.addi %98, %c1_i32_50 : i32
      %100 = arith.index_cast %99 : i32 to index
      %101 = memref.load %arg2[%100] : memref<16xi32, #tpu.memory_space<smem>>
      %c1_i32_51 = arith.constant 1 : i32
      %102 = arith.addi %86, %c1_i32_51 : i32
      %c0_i32_52 = arith.constant 0 : i32
      %103 = tpu.memref_slice %arg4[%101, %c0_i32_52] : memref<64x128xf32, #tpu.memory_space<any>> -> memref<1x128xf32, #tpu.memory_space<any>>
      %c0_i32_53 = arith.constant 0 : i32
      %c0_i32_54 = arith.constant 0 : i32
      %104 = tpu.memref_slice %arg10[%9, %c0_i32_53, %c0_i32_54] : memref<2x8x128xf32, #tpu.memory_space<vmem>> -> memref<1x8x128xf32, #tpu.memory_space<vmem>>
      %105 = tpu.memref_squeeze %104 : memref<1x8x128xf32, #tpu.memory_space<vmem>> -> memref<8x128xf32, #tpu.memory_space<vmem>>
      %c0_i32_55 = arith.constant 0 : i32
      %106 = tpu.memref_slice %105[%102, %c0_i32_55] : memref<8x128xf32, #tpu.memory_space<vmem>> -> memref<1x128xf32, #tpu.memory_space<vmem>>
      %107 = tpu.memref_slice %arg11[%9, %85] : memref<2x1x!tpu.dma_semaphore, #tpu.memory_space<semaphore_mem>> -> memref<1x1x!tpu.dma_semaphore, #tpu.memory_space<semaphore_mem>>
      %108 = tpu.memref_squeeze %107 : memref<1x1x!tpu.dma_semaphore, #tpu.memory_space<semaphore_mem>> -> memref<!tpu.dma_semaphore, #tpu.memory_space<semaphore_mem>>
      tpu.enqueue_dma source(%103 : memref<1x128xf32, #tpu.memory_space<any>>) target(%106 : memref<1x128xf32, #tpu.memory_space<vmem>>) target_semaphore(%108 : memref<!tpu.dma_semaphore, #tpu.memory_space<semaphore_mem>>)
      %109 = arith.addi %12, %86 : i32
      %c2_i32_56 = arith.constant 2 : i32
      %110 = arith.addi %109, %c2_i32_56 : i32
      %111 = arith.index_cast %110 : i32 to index
      %112 = memref.load %arg2[%111] : memref<16xi32, #tpu.memory_space<smem>>
      %c2_i32_57 = arith.constant 2 : i32
      %113 = arith.addi %86, %c2_i32_57 : i32
      %c0_i32_58 = arith.constant 0 : i32
      %114 = tpu.memref_slice %arg4[%112, %c0_i32_58] : memref<64x128xf32, #tpu.memory_space<any>> -> memref<1x128xf32, #tpu.memory_space<any>>
      %c0_i32_59 = arith.constant 0 : i32
      %c0_i32_60 = arith.constant 0 : i32
      %115 = tpu.memref_slice %arg10[%9, %c0_i32_59, %c0_i32_60] : memref<2x8x128xf32, #tpu.memory_space<vmem>> -> memref<1x8x128xf32, #tpu.memory_space<vmem>>
      %116 = tpu.memref_squeeze %115 : memref<1x8x128xf32, #tpu.memory_space<vmem>> -> memref<8x128xf32, #tpu.memory_space<vmem>>
      %c0_i32_61 = arith.constant 0 : i32
      %117 = tpu.memref_slice %116[%113, %c0_i32_61] : memref<8x128xf32, #tpu.memory_space<vmem>> -> memref<1x128xf32, #tpu.memory_space<vmem>>
      %118 = tpu.memref_slice %arg11[%9, %85] : memref<2x1x!tpu.dma_semaphore, #tpu.memory_space<semaphore_mem>> -> memref<1x1x!tpu.dma_semaphore, #tpu.memory_space<semaphore_mem>>
      %119 = tpu.memref_squeeze %118 : memref<1x1x!tpu.dma_semaphore, #tpu.memory_space<semaphore_mem>> -> memref<!tpu.dma_semaphore, #tpu.memory_space<semaphore_mem>>
      tpu.enqueue_dma source(%114 : memref<1x128xf32, #tpu.memory_space<any>>) target(%117 : memref<1x128xf32, #tpu.memory_space<vmem>>) target_semaphore(%119 : memref<!tpu.dma_semaphore, #tpu.memory_space<semaphore_mem>>)
      %120 = arith.addi %12, %86 : i32
      %c3_i32 = arith.constant 3 : i32
      %121 = arith.addi %120, %c3_i32 : i32
      %122 = arith.index_cast %121 : i32 to index
      %123 = memref.load %arg2[%122] : memref<16xi32, #tpu.memory_space<smem>>
      %c3_i32_62 = arith.constant 3 : i32
      %124 = arith.addi %86, %c3_i32_62 : i32
      %c0_i32_63 = arith.constant 0 : i32
      %125 = tpu.memref_slice %arg4[%123, %c0_i32_63] : memref<64x128xf32, #tpu.memory_space<any>> -> memref<1x128xf32, #tpu.memory_space<any>>
      %c0_i32_64 = arith.constant 0 : i32
      %c0_i32_65 = arith.constant 0 : i32
      %126 = tpu.memref_slice %arg10[%9, %c0_i32_64, %c0_i32_65] : memref<2x8x128xf32, #tpu.memory_space<vmem>> -> memref<1x8x128xf32, #tpu.memory_space<vmem>>
      %127 = tpu.memref_squeeze %126 : memref<1x8x128xf32, #tpu.memory_space<vmem>> -> memref<8x128xf32, #tpu.memory_space<vmem>>
      %c0_i32_66 = arith.constant 0 : i32
      %128 = tpu.memref_slice %127[%124, %c0_i32_66] : memref<8x128xf32, #tpu.memory_space<vmem>> -> memref<1x128xf32, #tpu.memory_space<vmem>>
      %129 = tpu.memref_slice %arg11[%9, %85] : memref<2x1x!tpu.dma_semaphore, #tpu.memory_space<semaphore_mem>> -> memref<1x1x!tpu.dma_semaphore, #tpu.memory_space<semaphore_mem>>
      %130 = tpu.memref_squeeze %129 : memref<1x1x!tpu.dma_semaphore, #tpu.memory_space<semaphore_mem>> -> memref<!tpu.dma_semaphore, #tpu.memory_space<semaphore_mem>>
      tpu.enqueue_dma source(%125 : memref<1x128xf32, #tpu.memory_space<any>>) target(%128 : memref<1x128xf32, #tpu.memory_space<vmem>>) target_semaphore(%130 : memref<!tpu.dma_semaphore, #tpu.memory_space<semaphore_mem>>)
      %131 = arith.addi %12, %86 : i32
      %c4_i32 = arith.constant 4 : i32
      %132 = arith.addi %131, %c4_i32 : i32
      %133 = arith.index_cast %132 : i32 to index
      %134 = memref.load %arg2[%133] : memref<16xi32, #tpu.memory_space<smem>>
      %c4_i32_67 = arith.constant 4 : i32
      %135 = arith.addi %86, %c4_i32_67 : i32
      %c0_i32_68 = arith.constant 0 : i32
      %136 = tpu.memref_slice %arg4[%134, %c0_i32_68] : memref<64x128xf32, #tpu.memory_space<any>> -> memref<1x128xf32, #tpu.memory_space<any>>
      %c0_i32_69 = arith.constant 0 : i32
      %c0_i32_70 = arith.constant 0 : i32
      %137 = tpu.memref_slice %arg10[%9, %c0_i32_69, %c0_i32_70] : memref<2x8x128xf32, #tpu.memory_space<vmem>> -> memref<1x8x128xf32, #tpu.memory_space<vmem>>
      %138 = tpu.memref_squeeze %137 : memref<1x8x128xf32, #tpu.memory_space<vmem>> -> memref<8x128xf32, #tpu.memory_space<vmem>>
      %c0_i32_71 = arith.constant 0 : i32
      %139 = tpu.memref_slice %138[%135, %c0_i32_71] : memref<8x128xf32, #tpu.memory_space<vmem>> -> memref<1x128xf32, #tpu.memory_space<vmem>>
      %140 = tpu.memref_slice %arg11[%9, %85] : memref<2x1x!tpu.dma_semaphore, #tpu.memory_space<semaphore_mem>> -> memref<1x1x!tpu.dma_semaphore, #tpu.memory_space<semaphore_mem>>
      %141 = tpu.memref_squeeze %140 : memref<1x1x!tpu.dma_semaphore, #tpu.memory_space<semaphore_mem>> -> memref<!tpu.dma_semaphore, #tpu.memory_space<semaphore_mem>>
      tpu.enqueue_dma source(%136 : memref<1x128xf32, #tpu.memory_space<any>>) target(%139 : memref<1x128xf32, #tpu.memory_space<vmem>>) target_semaphore(%141 : memref<!tpu.dma_semaphore, #tpu.memory_space<semaphore_mem>>)
      %142 = arith.addi %12, %86 : i32
      %c5_i32 = arith.constant 5 : i32
      %143 = arith.addi %142, %c5_i32 : i32
      %144 = arith.index_cast %143 : i32 to index
      %145 = memref.load %arg2[%144] : memref<16xi32, #tpu.memory_space<smem>>
      %c5_i32_72 = arith.constant 5 : i32
      %146 = arith.addi %86, %c5_i32_72 : i32
      %c0_i32_73 = arith.constant 0 : i32
      %147 = tpu.memref_slice %arg4[%145, %c0_i32_73] : memref<64x128xf32, #tpu.memory_space<any>> -> memref<1x128xf32, #tpu.memory_space<any>>
      %c0_i32_74 = arith.constant 0 : i32
      %c0_i32_75 = arith.constant 0 : i32
      %148 = tpu.memref_slice %arg10[%9, %c0_i32_74, %c0_i32_75] : memref<2x8x128xf32, #tpu.memory_space<vmem>> -> memref<1x8x128xf32, #tpu.memory_space<vmem>>
      %149 = tpu.memref_squeeze %148 : memref<1x8x128xf32, #tpu.memory_space<vmem>> -> memref<8x128xf32, #tpu.memory_space<vmem>>
      %c0_i32_76 = arith.constant 0 : i32
      %150 = tpu.memref_slice %149[%146, %c0_i32_76] : memref<8x128xf32, #tpu.memory_space<vmem>> -> memref<1x128xf32, #tpu.memory_space<vmem>>
      %151 = tpu.memref_slice %arg11[%9, %85] : memref<2x1x!tpu.dma_semaphore, #tpu.memory_space<semaphore_mem>> -> memref<1x1x!tpu.dma_semaphore, #tpu.memory_space<semaphore_mem>>
      %152 = tpu.memref_squeeze %151 : memref<1x1x!tpu.dma_semaphore, #tpu.memory_space<semaphore_mem>> -> memref<!tpu.dma_semaphore, #tpu.memory_space<semaphore_mem>>
      tpu.enqueue_dma source(%147 : memref<1x128xf32, #tpu.memory_space<any>>) target(%150 : memref<1x128xf32, #tpu.memory_space<vmem>>) target_semaphore(%152 : memref<!tpu.dma_semaphore, #tpu.memory_space<semaphore_mem>>)
      %153 = arith.addi %12, %86 : i32
      %c6_i32 = arith.constant 6 : i32
      %154 = arith.addi %153, %c6_i32 : i32
      %155 = arith.index_cast %154 : i32 to index
      %156 = memref.load %arg2[%155] : memref<16xi32, #tpu.memory_space<smem>>
      %c6_i32_77 = arith.constant 6 : i32
      %157 = arith.addi %86, %c6_i32_77 : i32
      %c0_i32_78 = arith.constant 0 : i32
      %158 = tpu.memref_slice %arg4[%156, %c0_i32_78] : memref<64x128xf32, #tpu.memory_space<any>> -> memref<1x128xf32, #tpu.memory_space<any>>
      %c0_i32_79 = arith.constant 0 : i32
      %c0_i32_80 = arith.constant 0 : i32
      %159 = tpu.memref_slice %arg10[%9, %c0_i32_79, %c0_i32_80] : memref<2x8x128xf32, #tpu.memory_space<vmem>> -> memref<1x8x128xf32, #tpu.memory_space<vmem>>
      %160 = tpu.memref_squeeze %159 : memref<1x8x128xf32, #tpu.memory_space<vmem>> -> memref<8x128xf32, #tpu.memory_space<vmem>>
      %c0_i32_81 = arith.constant 0 : i32
      %161 = tpu.memref_slice %160[%157, %c0_i32_81] : memref<8x128xf32, #tpu.memory_space<vmem>> -> memref<1x128xf32, #tpu.memory_space<vmem>>
      %162 = tpu.memref_slice %arg11[%9, %85] : memref<2x1x!tpu.dma_semaphore, #tpu.memory_space<semaphore_mem>> -> memref<1x1x!tpu.dma_semaphore, #tpu.memory_space<semaphore_mem>>
      %163 = tpu.memref_squeeze %162 : memref<1x1x!tpu.dma_semaphore, #tpu.memory_space<semaphore_mem>> -> memref<!tpu.dma_semaphore, #tpu.memory_space<semaphore_mem>>
      tpu.enqueue_dma source(%158 : memref<1x128xf32, #tpu.memory_space<any>>) target(%161 : memref<1x128xf32, #tpu.memory_space<vmem>>) target_semaphore(%163 : memref<!tpu.dma_semaphore, #tpu.memory_space<semaphore_mem>>)
      %164 = arith.addi %12, %86 : i32
      %c7_i32 = arith.constant 7 : i32
      %165 = arith.addi %164, %c7_i32 : i32
      %166 = arith.index_cast %165 : i32 to index
      %167 = memref.load %arg2[%166] : memref<16xi32, #tpu.memory_space<smem>>
      %c7_i32_82 = arith.constant 7 : i32
      %168 = arith.addi %86, %c7_i32_82 : i32
      %c0_i32_83 = arith.constant 0 : i32
      %169 = tpu.memref_slice %arg4[%167, %c0_i32_83] : memref<64x128xf32, #tpu.memory_space<any>> -> memref<1x128xf32, #tpu.memory_space<any>>
      %c0_i32_84 = arith.constant 0 : i32
      %c0_i32_85 = arith.constant 0 : i32
      %170 = tpu.memref_slice %arg10[%9, %c0_i32_84, %c0_i32_85] : memref<2x8x128xf32, #tpu.memory_space<vmem>> -> memref<1x8x128xf32, #tpu.memory_space<vmem>>
      %171 = tpu.memref_squeeze %170 : memref<1x8x128xf32, #tpu.memory_space<vmem>> -> memref<8x128xf32, #tpu.memory_space<vmem>>
      %c0_i32_86 = arith.constant 0 : i32
      %172 = tpu.memref_slice %171[%168, %c0_i32_86] : memref<8x128xf32, #tpu.memory_space<vmem>> -> memref<1x128xf32, #tpu.memory_space<vmem>>
      %173 = tpu.memref_slice %arg11[%9, %85] : memref<2x1x!tpu.dma_semaphore, #tpu.memory_space<semaphore_mem>> -> memref<1x1x!tpu.dma_semaphore, #tpu.memory_space<semaphore_mem>>
      %174 = tpu.memref_squeeze %173 : memref<1x1x!tpu.dma_semaphore, #tpu.memory_space<semaphore_mem>> -> memref<!tpu.dma_semaphore, #tpu.memory_space<semaphore_mem>>
      tpu.enqueue_dma source(%169 : memref<1x128xf32, #tpu.memory_space<any>>) target(%172 : memref<1x128xf32, #tpu.memory_space<vmem>>) target_semaphore(%174 : memref<!tpu.dma_semaphore, #tpu.memory_space<semaphore_mem>>)
      %c1_i32_87 = arith.constant 1 : i32
    } else {
    }
    %c1_i32_6 = arith.constant 1 : i32
    %16 = arith.addi %arg1, %c1_i32_6 : i32
    %c1_i32_7 = arith.constant 1 : i32
    %17 = arith.cmpi slt, %16, %c1_i32_7 : i32
    %18 = arith.extui %17 : i1 to i32
    %c0_i32_8 = arith.constant 0 : i32
    %19 = arith.cmpi ne, %18, %c0_i32_8 : i32
    scf.if %19 {
      %c8_i32_40 = arith.constant 8 : i32
      %84 = arith.addi %12, %c8_i32_40 : i32
      %c1_i32_41 = arith.constant 1 : i32
      %85 = arith.subi %c1_i32_41, %9 : i32
      %c0_i32_42 = arith.constant 0 : i32
      %c1_i32_43 = arith.constant 1 : i32
      %86 = arith.muli %c0_i32_42, %c1_i32_43 : i32
      %c0_i32_44 = arith.constant 0 : i32
      %87 = arith.addi %c0_i32_44, %86 : i32
      %c8_i32_45 = arith.constant 8 : i32
      %88 = arith.muli %87, %c8_i32_45 : i32
      %89 = arith.addi %84, %88 : i32
      %c0_i32_46 = arith.constant 0 : i32
      %90 = arith.addi %89, %c0_i32_46 : i32
      %91 = arith.index_cast %90 : i32 to index
      %92 = memref.load %arg2[%91] : memref<16xi32, #tpu.memory_space<smem>>
      %c0_i32_47 = arith.constant 0 : i32
      %93 = arith.addi %88, %c0_i32_47 : i32
      %c0_i32_48 = arith.constant 0 : i32
      %94 = tpu.memref_slice %arg4[%92, %c0_i32_48] : memref<64x128xf32, #tpu.memory_space<any>> -> memref<1x128xf32, #tpu.memory_space<any>>
      %c0_i32_49 = arith.constant 0 : i32
      %c0_i32_50 = arith.constant 0 : i32
      %95 = tpu.memref_slice %arg10[%85, %c0_i32_49, %c0_i32_50] : memref<2x8x128xf32, #tpu.memory_space<vmem>> -> memref<1x8x128xf32, #tpu.memory_space<vmem>>
      %96 = tpu.memref_squeeze %95 : memref<1x8x128xf32, #tpu.memory_space<vmem>> -> memref<8x128xf32, #tpu.memory_space<vmem>>
      %c0_i32_51 = arith.constant 0 : i32
      %97 = tpu.memref_slice %96[%93, %c0_i32_51] : memref<8x128xf32, #tpu.memory_space<vmem>> -> memref<1x128xf32, #tpu.memory_space<vmem>>
      %98 = tpu.memref_slice %arg11[%85, %87] : memref<2x1x!tpu.dma_semaphore, #tpu.memory_space<semaphore_mem>> -> memref<1x1x!tpu.dma_semaphore, #tpu.memory_space<semaphore_mem>>
      %99 = tpu.memref_squeeze %98 : memref<1x1x!tpu.dma_semaphore, #tpu.memory_space<semaphore_mem>> -> memref<!tpu.dma_semaphore, #tpu.memory_space<semaphore_mem>>
      tpu.enqueue_dma source(%94 : memref<1x128xf32, #tpu.memory_space<any>>) target(%97 : memref<1x128xf32, #tpu.memory_space<vmem>>) target_semaphore(%99 : memref<!tpu.dma_semaphore, #tpu.memory_space<semaphore_mem>>)
      %100 = arith.addi %84, %88 : i32
      %c1_i32_52 = arith.constant 1 : i32
      %101 = arith.addi %100, %c1_i32_52 : i32
      %102 = arith.index_cast %101 : i32 to index
      %103 = memref.load %arg2[%102] : memref<16xi32, #tpu.memory_space<smem>>
      %c1_i32_53 = arith.constant 1 : i32
      %104 = arith.addi %88, %c1_i32_53 : i32
      %c0_i32_54 = arith.constant 0 : i32
      %105 = tpu.memref_slice %arg4[%103, %c0_i32_54] : memref<64x128xf32, #tpu.memory_space<any>> -> memref<1x128xf32, #tpu.memory_space<any>>
      %c0_i32_55 = arith.constant 0 : i32
      %c0_i32_56 = arith.constant 0 : i32
      %106 = tpu.memref_slice %arg10[%85, %c0_i32_55, %c0_i32_56] : memref<2x8x128xf32, #tpu.memory_space<vmem>> -> memref<1x8x128xf32, #tpu.memory_space<vmem>>
      %107 = tpu.memref_squeeze %106 : memref<1x8x128xf32, #tpu.memory_space<vmem>> -> memref<8x128xf32, #tpu.memory_space<vmem>>
      %c0_i32_57 = arith.constant 0 : i32
      %108 = tpu.memref_slice %107[%104, %c0_i32_57] : memref<8x128xf32, #tpu.memory_space<vmem>> -> memref<1x128xf32, #tpu.memory_space<vmem>>
      %109 = tpu.memref_slice %arg11[%85, %87] : memref<2x1x!tpu.dma_semaphore, #tpu.memory_space<semaphore_mem>> -> memref<1x1x!tpu.dma_semaphore, #tpu.memory_space<semaphore_mem>>
      %110 = tpu.memref_squeeze %109 : memref<1x1x!tpu.dma_semaphore, #tpu.memory_space<semaphore_mem>> -> memref<!tpu.dma_semaphore, #tpu.memory_space<semaphore_mem>>
      tpu.enqueue_dma source(%105 : memref<1x128xf32, #tpu.memory_space<any>>) target(%108 : memref<1x128xf32, #tpu.memory_space<vmem>>) target_semaphore(%110 : memref<!tpu.dma_semaphore, #tpu.memory_space<semaphore_mem>>)
      %111 = arith.addi %84, %88 : i32
      %c2_i32_58 = arith.constant 2 : i32
      %112 = arith.addi %111, %c2_i32_58 : i32
      %113 = arith.index_cast %112 : i32 to index
      %114 = memref.load %arg2[%113] : memref<16xi32, #tpu.memory_space<smem>>
      %c2_i32_59 = arith.constant 2 : i32
      %115 = arith.addi %88, %c2_i32_59 : i32
      %c0_i32_60 = arith.constant 0 : i32
      %116 = tpu.memref_slice %arg4[%114, %c0_i32_60] : memref<64x128xf32, #tpu.memory_space<any>> -> memref<1x128xf32, #tpu.memory_space<any>>
      %c0_i32_61 = arith.constant 0 : i32
      %c0_i32_62 = arith.constant 0 : i32
      %117 = tpu.memref_slice %arg10[%85, %c0_i32_61, %c0_i32_62] : memref<2x8x128xf32, #tpu.memory_space<vmem>> -> memref<1x8x128xf32, #tpu.memory_space<vmem>>
      %118 = tpu.memref_squeeze %117 : memref<1x8x128xf32, #tpu.memory_space<vmem>> -> memref<8x128xf32, #tpu.memory_space<vmem>>
      %c0_i32_63 = arith.constant 0 : i32
      %119 = tpu.memref_slice %118[%115, %c0_i32_63] : memref<8x128xf32, #tpu.memory_space<vmem>> -> memref<1x128xf32, #tpu.memory_space<vmem>>
      %120 = tpu.memref_slice %arg11[%85, %87] : memref<2x1x!tpu.dma_semaphore, #tpu.memory_space<semaphore_mem>> -> memref<1x1x!tpu.dma_semaphore, #tpu.memory_space<semaphore_mem>>
      %121 = tpu.memref_squeeze %120 : memref<1x1x!tpu.dma_semaphore, #tpu.memory_space<semaphore_mem>> -> memref<!tpu.dma_semaphore, #tpu.memory_space<semaphore_mem>>
      tpu.enqueue_dma source(%116 : memref<1x128xf32, #tpu.memory_space<any>>) target(%119 : memref<1x128xf32, #tpu.memory_space<vmem>>) target_semaphore(%121 : memref<!tpu.dma_semaphore, #tpu.memory_space<semaphore_mem>>)
      %122 = arith.addi %84, %88 : i32
      %c3_i32 = arith.constant 3 : i32
      %123 = arith.addi %122, %c3_i32 : i32
      %124 = arith.index_cast %123 : i32 to index
      %125 = memref.load %arg2[%124] : memref<16xi32, #tpu.memory_space<smem>>
      %c3_i32_64 = arith.constant 3 : i32
      %126 = arith.addi %88, %c3_i32_64 : i32
      %c0_i32_65 = arith.constant 0 : i32
      %127 = tpu.memref_slice %arg4[%125, %c0_i32_65] : memref<64x128xf32, #tpu.memory_space<any>> -> memref<1x128xf32, #tpu.memory_space<any>>
      %c0_i32_66 = arith.constant 0 : i32
      %c0_i32_67 = arith.constant 0 : i32
      %128 = tpu.memref_slice %arg10[%85, %c0_i32_66, %c0_i32_67] : memref<2x8x128xf32, #tpu.memory_space<vmem>> -> memref<1x8x128xf32, #tpu.memory_space<vmem>>
      %129 = tpu.memref_squeeze %128 : memref<1x8x128xf32, #tpu.memory_space<vmem>> -> memref<8x128xf32, #tpu.memory_space<vmem>>
      %c0_i32_68 = arith.constant 0 : i32
      %130 = tpu.memref_slice %129[%126, %c0_i32_68] : memref<8x128xf32, #tpu.memory_space<vmem>> -> memref<1x128xf32, #tpu.memory_space<vmem>>
      %131 = tpu.memref_slice %arg11[%85, %87] : memref<2x1x!tpu.dma_semaphore, #tpu.memory_space<semaphore_mem>> -> memref<1x1x!tpu.dma_semaphore, #tpu.memory_space<semaphore_mem>>
      %132 = tpu.memref_squeeze %131 : memref<1x1x!tpu.dma_semaphore, #tpu.memory_space<semaphore_mem>> -> memref<!tpu.dma_semaphore, #tpu.memory_space<semaphore_mem>>
      tpu.enqueue_dma source(%127 : memref<1x128xf32, #tpu.memory_space<any>>) target(%130 : memref<1x128xf32, #tpu.memory_space<vmem>>) target_semaphore(%132 : memref<!tpu.dma_semaphore, #tpu.memory_space<semaphore_mem>>)
      %133 = arith.addi %84, %88 : i32
      %c4_i32 = arith.constant 4 : i32
      %134 = arith.addi %133, %c4_i32 : i32
      %135 = arith.index_cast %134 : i32 to index
      %136 = memref.load %arg2[%135] : memref<16xi32, #tpu.memory_space<smem>>
      %c4_i32_69 = arith.constant 4 : i32
      %137 = arith.addi %88, %c4_i32_69 : i32
      %c0_i32_70 = arith.constant 0 : i32
      %138 = tpu.memref_slice %arg4[%136, %c0_i32_70] : memref<64x128xf32, #tpu.memory_space<any>> -> memref<1x128xf32, #tpu.memory_space<any>>
      %c0_i32_71 = arith.constant 0 : i32
      %c0_i32_72 = arith.constant 0 : i32
      %139 = tpu.memref_slice %arg10[%85, %c0_i32_71, %c0_i32_72] : memref<2x8x128xf32, #tpu.memory_space<vmem>> -> memref<1x8x128xf32, #tpu.memory_space<vmem>>
      %140 = tpu.memref_squeeze %139 : memref<1x8x128xf32, #tpu.memory_space<vmem>> -> memref<8x128xf32, #tpu.memory_space<vmem>>
      %c0_i32_73 = arith.constant 0 : i32
      %141 = tpu.memref_slice %140[%137, %c0_i32_73] : memref<8x128xf32, #tpu.memory_space<vmem>> -> memref<1x128xf32, #tpu.memory_space<vmem>>
      %142 = tpu.memref_slice %arg11[%85, %87] : memref<2x1x!tpu.dma_semaphore, #tpu.memory_space<semaphore_mem>> -> memref<1x1x!tpu.dma_semaphore, #tpu.memory_space<semaphore_mem>>
      %143 = tpu.memref_squeeze %142 : memref<1x1x!tpu.dma_semaphore, #tpu.memory_space<semaphore_mem>> -> memref<!tpu.dma_semaphore, #tpu.memory_space<semaphore_mem>>
      tpu.enqueue_dma source(%138 : memref<1x128xf32, #tpu.memory_space<any>>) target(%141 : memref<1x128xf32, #tpu.memory_space<vmem>>) target_semaphore(%143 : memref<!tpu.dma_semaphore, #tpu.memory_space<semaphore_mem>>)
      %144 = arith.addi %84, %88 : i32
      %c5_i32 = arith.constant 5 : i32
      %145 = arith.addi %144, %c5_i32 : i32
      %146 = arith.index_cast %145 : i32 to index
      %147 = memref.load %arg2[%146] : memref<16xi32, #tpu.memory_space<smem>>
      %c5_i32_74 = arith.constant 5 : i32
      %148 = arith.addi %88, %c5_i32_74 : i32
      %c0_i32_75 = arith.constant 0 : i32
      %149 = tpu.memref_slice %arg4[%147, %c0_i32_75] : memref<64x128xf32, #tpu.memory_space<any>> -> memref<1x128xf32, #tpu.memory_space<any>>
      %c0_i32_76 = arith.constant 0 : i32
      %c0_i32_77 = arith.constant 0 : i32
      %150 = tpu.memref_slice %arg10[%85, %c0_i32_76, %c0_i32_77] : memref<2x8x128xf32, #tpu.memory_space<vmem>> -> memref<1x8x128xf32, #tpu.memory_space<vmem>>
      %151 = tpu.memref_squeeze %150 : memref<1x8x128xf32, #tpu.memory_space<vmem>> -> memref<8x128xf32, #tpu.memory_space<vmem>>
      %c0_i32_78 = arith.constant 0 : i32
      %152 = tpu.memref_slice %151[%148, %c0_i32_78] : memref<8x128xf32, #tpu.memory_space<vmem>> -> memref<1x128xf32, #tpu.memory_space<vmem>>
      %153 = tpu.memref_slice %arg11[%85, %87] : memref<2x1x!tpu.dma_semaphore, #tpu.memory_space<semaphore_mem>> -> memref<1x1x!tpu.dma_semaphore, #tpu.memory_space<semaphore_mem>>
      %154 = tpu.memref_squeeze %153 : memref<1x1x!tpu.dma_semaphore, #tpu.memory_space<semaphore_mem>> -> memref<!tpu.dma_semaphore, #tpu.memory_space<semaphore_mem>>
      tpu.enqueue_dma source(%149 : memref<1x128xf32, #tpu.memory_space<any>>) target(%152 : memref<1x128xf32, #tpu.memory_space<vmem>>) target_semaphore(%154 : memref<!tpu.dma_semaphore, #tpu.memory_space<semaphore_mem>>)
      %155 = arith.addi %84, %88 : i32
      %c6_i32 = arith.constant 6 : i32
      %156 = arith.addi %155, %c6_i32 : i32
      %157 = arith.index_cast %156 : i32 to index
      %158 = memref.load %arg2[%157] : memref<16xi32, #tpu.memory_space<smem>>
      %c6_i32_79 = arith.constant 6 : i32
      %159 = arith.addi %88, %c6_i32_79 : i32
      %c0_i32_80 = arith.constant 0 : i32
      %160 = tpu.memref_slice %arg4[%158, %c0_i32_80] : memref<64x128xf32, #tpu.memory_space<any>> -> memref<1x128xf32, #tpu.memory_space<any>>
      %c0_i32_81 = arith.constant 0 : i32
      %c0_i32_82 = arith.constant 0 : i32
      %161 = tpu.memref_slice %arg10[%85, %c0_i32_81, %c0_i32_82] : memref<2x8x128xf32, #tpu.memory_space<vmem>> -> memref<1x8x128xf32, #tpu.memory_space<vmem>>
      %162 = tpu.memref_squeeze %161 : memref<1x8x128xf32, #tpu.memory_space<vmem>> -> memref<8x128xf32, #tpu.memory_space<vmem>>
      %c0_i32_83 = arith.constant 0 : i32
      %163 = tpu.memref_slice %162[%159, %c0_i32_83] : memref<8x128xf32, #tpu.memory_space<vmem>> -> memref<1x128xf32, #tpu.memory_space<vmem>>
      %164 = tpu.memref_slice %arg11[%85, %87] : memref<2x1x!tpu.dma_semaphore, #tpu.memory_space<semaphore_mem>> -> memref<1x1x!tpu.dma_semaphore, #tpu.memory_space<semaphore_mem>>
      %165 = tpu.memref_squeeze %164 : memref<1x1x!tpu.dma_semaphore, #tpu.memory_space<semaphore_mem>> -> memref<!tpu.dma_semaphore, #tpu.memory_space<semaphore_mem>>
      tpu.enqueue_dma source(%160 : memref<1x128xf32, #tpu.memory_space<any>>) target(%163 : memref<1x128xf32, #tpu.memory_space<vmem>>) target_semaphore(%165 : memref<!tpu.dma_semaphore, #tpu.memory_space<semaphore_mem>>)
      %166 = arith.addi %84, %88 : i32
      %c7_i32 = arith.constant 7 : i32
      %167 = arith.addi %166, %c7_i32 : i32
      %168 = arith.index_cast %167 : i32 to index
      %169 = memref.load %arg2[%168] : memref<16xi32, #tpu.memory_space<smem>>
      %c7_i32_84 = arith.constant 7 : i32
      %170 = arith.addi %88, %c7_i32_84 : i32
      %c0_i32_85 = arith.constant 0 : i32
      %171 = tpu.memref_slice %arg4[%169, %c0_i32_85] : memref<64x128xf32, #tpu.memory_space<any>> -> memref<1x128xf32, #tpu.memory_space<any>>
      %c0_i32_86 = arith.constant 0 : i32
      %c0_i32_87 = arith.constant 0 : i32
      %172 = tpu.memref_slice %arg10[%85, %c0_i32_86, %c0_i32_87] : memref<2x8x128xf32, #tpu.memory_space<vmem>> -> memref<1x8x128xf32, #tpu.memory_space<vmem>>
      %173 = tpu.memref_squeeze %172 : memref<1x8x128xf32, #tpu.memory_space<vmem>> -> memref<8x128xf32, #tpu.memory_space<vmem>>
      %c0_i32_88 = arith.constant 0 : i32
      %174 = tpu.memref_slice %173[%170, %c0_i32_88] : memref<8x128xf32, #tpu.memory_space<vmem>> -> memref<1x128xf32, #tpu.memory_space<vmem>>
      %175 = tpu.memref_slice %arg11[%85, %87] : memref<2x1x!tpu.dma_semaphore, #tpu.memory_space<semaphore_mem>> -> memref<1x1x!tpu.dma_semaphore, #tpu.memory_space<semaphore_mem>>
      %176 = tpu.memref_squeeze %175 : memref<1x1x!tpu.dma_semaphore, #tpu.memory_space<semaphore_mem>> -> memref<!tpu.dma_semaphore, #tpu.memory_space<semaphore_mem>>
      tpu.enqueue_dma source(%171 : memref<1x128xf32, #tpu.memory_space<any>>) target(%174 : memref<1x128xf32, #tpu.memory_space<vmem>>) target_semaphore(%176 : memref<!tpu.dma_semaphore, #tpu.memory_space<semaphore_mem>>)
      %c1_i32_89 = arith.constant 1 : i32
    } else {
    }
    %c8_i32_9 = arith.constant 8 : i32
    %20 = arith.muli %arg1, %c8_i32_9 : i32
    %21 = tpu.assume_multiple %20, 8 : i32
    %22 = arith.index_cast %21 : i32 to index
    %c0 = arith.constant 0 : index
    %23 = vector.load %arg6[%22, %c0] : memref<16x128xf32, #tpu.memory_space<vmem>>, vector<8x128xf32>
    %c0_10 = arith.constant 0 : index
    %c0_11 = arith.constant 0 : index
    %24 = vector.load %arg3[%c0_10, %c0_11] : memref<8x1xi32, #tpu.memory_space<vmem>>, vector<8x1xi32>
    %c0_12 = arith.constant 0 : index
    %c0_13 = arith.constant 0 : index
    %25 = vector.load %arg5[%c0_12, %c0_13] : memref<2x128xf32, #tpu.memory_space<vmem>>, vector<1x128xf32>
    %26 = vector.shape_cast %25 : vector<1x128xf32> to vector<128xf32>
    %27 = vector.shape_cast %26 : vector<128xf32> to vector<1x128xf32>
    %c1 = arith.constant 1 : index
    %c0_14 = arith.constant 0 : index
    %28 = vector.load %arg5[%c1, %c0_14] : memref<2x128xf32, #tpu.memory_space<vmem>>, vector<1x128xf32>
    %29 = vector.shape_cast %28 : vector<1x128xf32> to vector<128xf32>
    %30 = vector.shape_cast %29 : vector<128xf32> to vector<1x128xf32>
    %31 = vector.broadcast %27 : vector<1x128xf32> to vector<8x128xf32>
    %32 = arith.addf %23, %31 : vector<8x128xf32>
    %c1_i32_15 = arith.constant 1 : i32
    %33 = vector.broadcast %c1_i32_15 : i32 to vector<8x1xi32>
    %34 = arith.cmpi eq, %24, %33 : vector<8x1xi32>
    %35 = arith.subf %30, %27 : vector<1x128xf32>
    %cst = arith.constant 0.000000e+00 : f32
    %36 = vector.shape_cast %34 : vector<8x1xi1> to vector<8x1xi1>
    %37 = vector.broadcast %36 : vector<8x1xi1> to vector<8x128xi1>
    %38 = vector.shape_cast %35 : vector<1x128xf32> to vector<1x128xf32>
    %39 = vector.broadcast %38 : vector<1x128xf32> to vector<8x128xf32>
    %40 = vector.broadcast %cst : f32 to vector<8x128xf32>
    %41 = arith.select %37, %39, %40 : vector<8x128xi1>, vector<8x128xf32>
    %42 = arith.addf %32, %41 : vector<8x128xf32>
    %c0_i32_16 = arith.constant 0 : i32
    %c1_i32_17 = arith.constant 1 : i32
    %43 = arith.muli %c0_i32_16, %c1_i32_17 : i32
    %c0_i32_18 = arith.constant 0 : i32
    %44 = arith.addi %c0_i32_18, %43 : i32
    %c8_i32_19 = arith.constant 8 : i32
    %45 = arith.muli %44, %c8_i32_19 : i32
    %c0_i32_20 = arith.constant 0 : i32
    %c0_i32_21 = arith.constant 0 : i32
    %46 = tpu.memref_slice %arg4[%c0_i32_20, %c0_i32_21] : memref<64x128xf32, #tpu.memory_space<any>> -> memref<8x128xf32, #tpu.memory_space<any>>
    %c0_i32_22 = arith.constant 0 : i32
    %c0_i32_23 = arith.constant 0 : i32
    %47 = tpu.memref_slice %arg10[%9, %c0_i32_22, %c0_i32_23] : memref<2x8x128xf32, #tpu.memory_space<vmem>> -> memref<1x8x128xf32, #tpu.memory_space<vmem>>
    %48 = tpu.memref_squeeze %47 : memref<1x8x128xf32, #tpu.memory_space<vmem>> -> memref<8x128xf32, #tpu.memory_space<vmem>>
    %c0_i32_24 = arith.constant 0 : i32
    %49 = tpu.memref_slice %48[%45, %c0_i32_24] : memref<8x128xf32, #tpu.memory_space<vmem>> -> memref<8x128xf32, #tpu.memory_space<vmem>>
    %50 = tpu.memref_slice %arg11[%9, %44] : memref<2x1x!tpu.dma_semaphore, #tpu.memory_space<semaphore_mem>> -> memref<1x1x!tpu.dma_semaphore, #tpu.memory_space<semaphore_mem>>
    %51 = tpu.memref_squeeze %50 : memref<1x1x!tpu.dma_semaphore, #tpu.memory_space<semaphore_mem>> -> memref<!tpu.dma_semaphore, #tpu.memory_space<semaphore_mem>>
    tpu.wait_dma2 semaphore(%51 : memref<!tpu.dma_semaphore, #tpu.memory_space<semaphore_mem>>) src(%46 : memref<8x128xf32, #tpu.memory_space<any>>) dst(%49 : memref<8x128xf32, #tpu.memory_space<vmem>>)
    %c1_i32_25 = arith.constant 1 : i32
    %52 = arith.index_cast %9 : i32 to index
    %c0_26 = arith.constant 0 : index
    %c0_27 = arith.constant 0 : index
    %53 = vector.load %arg10[%52, %c0_26, %c0_27] : memref<2x8x128xf32, #tpu.memory_space<vmem>>, vector<1x8x128xf32>
    %54 = vector.shape_cast %53 : vector<1x8x128xf32> to vector<8x128xf32>
    %55 = arith.addf %42, %54 : vector<8x128xf32>
    %cst_28 = arith.constant dense<0.000000e+00> : vector<8xf32>
    %56 = vector.multi_reduction <add>, %55, %cst_28 [1] : vector<8x128xf32> to vector<8xf32>
    %57 = vector.shape_cast %56 : vector<8xf32> to vector<8x1xf32>
    %cst_29 = arith.constant 3.125000e-02 : f32
    %58 = vector.broadcast %cst_29 : f32 to vector<8x1xf32>
    %59 = arith.mulf %57, %58 : vector<8x1xf32>
    %60 = vector.broadcast %59 : vector<8x1xf32> to vector<8x128xf32>
    %61 = arith.subf %55, %60 : vector<8x128xf32>
    %62 = tpu.iota {dimensions = array<i32: 1>} : vector<8x128xi32>
    %c32_i32 = arith.constant 32 : i32
    %63 = vector.broadcast %c32_i32 : i32 to vector<8x128xi32>
    %64 = arith.cmpi slt, %62, %63 : vector<8x128xi32>
    %cst_30 = arith.constant 0.000000e+00 : f32
    %65 = vector.broadcast %cst_30 : f32 to vector<8x128xf32>
    %66 = arith.select %64, %61, %65 : vector<8x128xi1>, vector<8x128xf32>
    %67 = arith.mulf %66, %66 : vector<8x128xf32>
    %cst_31 = arith.constant dense<0.000000e+00> : vector<8xf32>
    %68 = vector.multi_reduction <add>, %67, %cst_31 [1] : vector<8x128xf32> to vector<8xf32>
    %69 = vector.shape_cast %68 : vector<8xf32> to vector<8x1xf32>
    %cst_32 = arith.constant 3.125000e-02 : f32
    %70 = vector.broadcast %cst_32 : f32 to vector<8x1xf32>
    %71 = arith.mulf %69, %70 : vector<8x1xf32>
    %cst_33 = arith.constant 9.99999996E-13 : f32
    %72 = vector.broadcast %cst_33 : f32 to vector<8x1xf32>
    %73 = arith.addf %71, %72 : vector<8x1xf32>
    %74 = math.rsqrt %73 : vector<8x1xf32>
    %c0_34 = arith.constant 0 : index
    %c0_35 = arith.constant 0 : index
    %75 = vector.load %arg7[%c0_34, %c0_35] : memref<1x128xf32, #tpu.memory_space<vmem>>, vector<1x128xf32>
    %76 = vector.broadcast %74 : vector<8x1xf32> to vector<8x128xf32>
    %77 = vector.broadcast %75 : vector<1x128xf32> to vector<8x128xf32>
    %78 = arith.mulf %76, %77 : vector<8x128xf32>
    %79 = arith.mulf %66, %78 : vector<8x128xf32>
    %c0_36 = arith.constant 0 : index
    %c0_37 = arith.constant 0 : index
    %80 = vector.load %arg8[%c0_36, %c0_37] : memref<1x128xf32, #tpu.memory_space<vmem>>, vector<1x128xf32>
    %81 = vector.broadcast %80 : vector<1x128xf32> to vector<8x128xf32>
    %82 = arith.addf %79, %81 : vector<8x128xf32>
    %c0_38 = arith.constant 0 : index
    %c0_39 = arith.constant 0 : index
    %83 = vector.load %arg9[%c0_38, %c0_39] : memref<8x128xf32, #tpu.memory_space<vmem>>, vector<8x128xf32>
    tpu.vector_store %arg9[%c0_38, %c0_39], %82 {strides = array<i32>} : memref<8x128xf32, #tpu.memory_space<vmem>>, vector<8x128xf32>,
    return
  }
  func.func @transform_0(%arg0: i32, %arg1: i32, %arg2: memref<16xi32, #tpu.memory_space<smem>>) -> (i32, i32) {
    %c1_i32 = arith.constant 1 : i32
    %0 = arith.muli %arg0, %c1_i32 : i32
    %1 = arith.addi %0, %arg1 : i32
    %c0_i32 = arith.constant 0 : i32
    %c0_i32_0 = arith.constant 0 : i32
    return %1, %c0_i32 : i32, i32
  }
  func.func @transform_2(%arg0: i32, %arg1: i32, %arg2: memref<16xi32, #tpu.memory_space<smem>>) -> (i32, i32) {
    %c0_i32 = arith.constant 0 : i32
    %c0_i32_0 = arith.constant 0 : i32
    %c0_i32_1 = arith.constant 0 : i32
    return %c0_i32, %c0_i32_0 : i32, i32
  }
  func.func @transform_3(%arg0: i32, %arg1: i32, %arg2: memref<16xi32, #tpu.memory_space<smem>>) -> (i32, i32) {
    %c0_i32 = arith.constant 0 : i32
    %c0_i32_0 = arith.constant 0 : i32
    %c0_i32_1 = arith.constant 0 : i32
    return %c0_i32, %c0_i32_0 : i32, i32
  }
  func.func @transform_4(%arg0: i32, %arg1: i32, %arg2: memref<16xi32, #tpu.memory_space<smem>>) -> (i32, i32) {
    %c0_i32 = arith.constant 0 : i32
    %c0_i32_0 = arith.constant 0 : i32
    %c0_i32_1 = arith.constant 0 : i32
    return %c0_i32, %c0_i32_0 : i32, i32
  }
  func.func @transform_5(%arg0: i32, %arg1: i32, %arg2: memref<16xi32, #tpu.memory_space<smem>>) -> (i32, i32) {
    %c0_i32 = arith.constant 0 : i32
    %c0_i32_0 = arith.constant 0 : i32
    %c0_i32_1 = arith.constant 0 : i32
    return %c0_i32, %c0_i32_0 : i32, i32
  }
  func.func @transform_6(%arg0: i32, %arg1: i32, %arg2: memref<16xi32, #tpu.memory_space<smem>>) -> (i32, i32) {
    %c1_i32 = arith.constant 1 : i32
    %0 = arith.muli %arg0, %c1_i32 : i32
    %1 = arith.addi %0, %arg1 : i32
    %c0_i32 = arith.constant 0 : i32
    %c0_i32_0 = arith.constant 0 : i32
    return %1, %c0_i32 : i32, i32
  }
}

</mosaic_0001>

<llo_original>
// kernel: tpu_custom_call.1
$region0: #{tpu_custom_call.1}
  #allocation0 [shape = 'u32[]', space=smem, size = 0x4, offset = 0x4, fixed_abs, tag = 'smem constant byte address 0x4 - core index']
  #allocation1 [shape = 'u32[72,128]{1,0:T(1,128)}', space=vmem, size = 0x9000, scoped, tag = 'internal scratch']
  #allocation2 [shape = 'f32[2,8,128]{2,1,0:T(8,128)}', space=vmem, size = 0x2000, scoped, tag = 'scratch operand']
  #allocation3 [shape = 's32[2]{0}', space=sflag, size = 0x8, scoped, tag = 'scratch operand']
  #allocation4 [shape = 's32[1]{0}', space=sflag, size = 0x4, scoped, tag = 'scoped memory for tpu_custom_call.1']
  #allocation5 [shape = 'u8[512]{0}', space=smem, size = 0x200, scoped, tag = 'prefetched SMEM operand 0']
  #allocation8 [shape = 's32[]', space=sflag, size = 0x4, offset = 0, fixed_abs, tag = 'sflag constant byte address 0x0 - dummy sync flag']
  #allocation9 [shape = 's32[]', space=sflag, size = 0x4, offset = 0, fixed_abs, tag = 'sflag constant byte address 0x0 - dummy sync flag']
  #allocation10 [shape = 'u32[]', space=smem, size = 0x4, offset = 0x44, fixed_abs, tag = 'smem constant byte address 0x44 - assertion arg 0']
  #allocation11 [shape = 'u32[]', space=smem, size = 0x4, offset = 0x48, fixed_abs, tag = 'smem constant byte address 0x48 - assertion arg 1']
  #allocation12 [shape = 's32[]', space=sflag, size = 0x4, offset = 0, fixed_abs, tag = 'sflag constant byte address 0x0 - dummy sync flag']
  #allocation13 [shape = 's32[]', space=sflag, size = 0x4, offset = 0, fixed_abs, tag = 'sflag constant byte address 0x0 - dummy sync flag']
  #allocation14 [shape = 's32[]', space=sflag, size = 0x4, offset = 0, fixed_abs, tag = 'sflag constant byte address 0x0 - dummy sync flag']
  #allocation15 [shape = 's32[]', space=sflag, size = 0x4, offset = 0, fixed_abs, tag = 'sflag constant byte address 0x0 - dummy sync flag']
  #allocation16 [shape = 's32[]', space=sflag, size = 0x4, offset = 0, fixed_abs, tag = 'sflag constant byte address 0x0 - dummy sync flag']
  #allocation17 [shape = 's32[]', space=sflag, size = 0x4, offset = 0, fixed_abs, tag = 'sflag constant byte address 0x0 - dummy sync flag']
  #allocation18 [shape = 's32[]', space=sflag, size = 0x4, offset = 0, fixed_abs, tag = 'sflag constant byte address 0x0 - dummy sync flag']
  #allocation19 [shape = 's32[]', space=sflag, size = 0x4, offset = 0, fixed_abs, tag = 'sflag constant byte address 0x0 - dummy sync flag']
  #allocation20 [shape = 's32[]', space=sflag, size = 0x4, offset = 0, fixed_abs, tag = 'sflag constant byte address 0x0 - dummy sync flag']
  #allocation21 [shape = 's32[]', space=sflag, size = 0x4, offset = 0, fixed_abs, tag = 'sflag constant byte address 0x0 - dummy sync flag']
  #allocation22 [shape = 's32[]', space=sflag, size = 0x4, offset = 0, fixed_abs, tag = 'sflag constant byte address 0x0 - dummy sync flag']
  #allocation23 [shape = 's32[]', space=sflag, size = 0x4, offset = 0, fixed_abs, tag = 'sflag constant byte address 0x0 - dummy sync flag']
  #allocation24 [shape = 's32[]', space=sflag, size = 0x4, offset = 0, fixed_abs, tag = 'sflag constant byte address 0x0 - dummy sync flag']
  #allocation25 [shape = 's32[]', space=sflag, size = 0x4, offset = 0, fixed_abs, tag = 'sflag constant byte address 0x0 - dummy sync flag']
  #allocation26 [shape = 's32[]', space=sflag, size = 0x4, offset = 0, fixed_abs, tag = 'sflag constant byte address 0x0 - dummy sync flag']
  #allocation27 [shape = 's32[]', space=sflag, size = 0x4, offset = 0, fixed_abs, tag = 'sflag constant byte address 0x0 - dummy sync flag']
  #allocation28 [shape = 's32[]', space=sflag, size = 0x4, offset = 0, fixed_abs, tag = 'sflag constant byte address 0x0 - dummy sync flag']
  #allocation29 [shape = 's32[]', space=sflag, size = 0x4, offset = 0, fixed_abs, tag = 'sflag constant byte address 0x0 - dummy sync flag']
  #allocation30 [shape = 's32[]', space=sflag, size = 0x4, offset = 0, fixed_abs, tag = 'sflag constant byte address 0x0 - dummy sync flag']
  #allocation31 [shape = 's32[]', space=sflag, size = 0x4, offset = 0, fixed_abs, tag = 'sflag constant byte address 0x0 - dummy sync flag']
  #allocation32 [shape = 's32[]', space=sflag, size = 0x4, offset = 0, fixed_abs, tag = 'sflag constant byte address 0x0 - dummy sync flag']
  #allocation33 [shape = 's32[]', space=sflag, size = 0x4, offset = 0, fixed_abs, tag = 'sflag constant byte address 0x0 - dummy sync flag']
  #allocation34 [shape = 's32[]', space=sflag, size = 0x4, offset = 0, fixed_abs, tag = 'sflag constant byte address 0x0 - dummy sync flag']
  #allocation35 [shape = 's32[]', space=sflag, size = 0x4, offset = 0, fixed_abs, tag = 'sflag constant byte address 0x0 - dummy sync flag']
  #allocation36 [shape = 's32[]', space=sflag, size = 0x4, offset = 0, fixed_abs, tag = 'sflag constant byte address 0x0 - dummy sync flag']
  #allocation37 [shape = 's32[]', space=sflag, size = 0x4, offset = 0, fixed_abs, tag = 'sflag constant byte address 0x0 - dummy sync flag']
  #allocation38 [shape = 's32[]', space=sflag, size = 0x4, offset = 0, fixed_abs, tag = 'sflag constant byte address 0x0 - dummy sync flag']
  #allocation39 [shape = 's32[]', space=sflag, size = 0x4, offset = 0, fixed_abs, tag = 'sflag constant byte address 0x0 - dummy sync flag']
  #allocation40 [shape = 's32[]', space=sflag, size = 0x4, offset = 0, fixed_abs, tag = 'sflag constant byte address 0x0 - dummy sync flag']
  #allocation41 [shape = 's32[]', space=sflag, size = 0x4, offset = 0, fixed_abs, tag = 'sflag constant byte address 0x0 - dummy sync flag']
  %s0 = inlined_call_operand.vmem [shape: s32[16], index: 0, kind: input, shape index: {}]
  %s1 = inlined_call_operand.vmem [shape: s32[16,1], index: 1, kind: input, shape index: {}]
  %s2 = inlined_call_operand.hbm [shape: f32[64,128], index: 2, kind: input, shape index: {}]
  %s3 = inlined_call_operand.vmem [shape: f32[2,128], index: 3, kind: input, shape index: {}]
  %s4 = inlined_call_operand.vmem [shape: f32[16,128], index: 4, kind: input, shape index: {}]
  %s5 = inlined_call_operand.vmem [shape: f32[1,128], index: 5, kind: input, shape index: {}]
  %s6 = inlined_call_operand.vmem [shape: f32[1,128], index: 6, kind: input, shape index: {}]
  %s7 = inlined_call_operand.hbm [shape: f32[16,128], index: 7, kind: output, shape index: {}]
  %s8 = sld [smem:[#allocation0]]
  $region125: #{tpu_custom_call.1} parent=0
    _
  %s10 = ssub.s32 1, %s8
  %s11 = scalar_select 0, %s10, %s8
  %s13 = sshll.u32 %s0, 4
  %s14 = int_to_ptr.vmem [resolvable:$true] %s13
  %16 = dma.vmem_to_smem %s14, 16, [#allocation5], [#allocation4]
  %18 = dma.done [#allocation4], 16
  %19 = sfence
  $region1: #{tpu_custom_call.1} parent=0
    #allocation6 [shape = 'u8[8192]{0}', space=vmem, size = 0x2000, scoped, tag = 'output window, operand 0']
    #allocation7 [shape = 's32[2]{0}', space=sflag, size = 0x8, scoped, tag = 'scoped memory for tpu_custom_call.1']
    %20 = vsyncpa [#allocation7], 0
    %s21 = scalar_lea.sflag [#allocation7], 1
    %22 = vsyncpa %s21, 0
    loop: start=0, step=1, limit=4
    $region2: #{tpu_custom_call.1} parent=1 // loop_pre_header
      _
    $region3: #{tpu_custom_call.1} parent=1 // loop_header
      %s24 = sphi 0, %s28
      %p25 = scmp.ge.s32.totalorder %s24, 4
      %s31 = sphi 0, %s43
      %s32 = sphi 0, %s39
      %s33 = sphi 0, %s31
      %s34 = sphi 0, %s32
      %s35 = sphi 0, %s33
      %s36 = sphi 0, %s34
      %s48 = sphi 0, %s50
      %s51 = sphi 0, %s48
      %s52 = sphi 0, %s51
      %s68 = sphi 0, %s52
      %s72 = sphi 0, %s72
      %s74 = sphi 0, %s72
      %s75 = sphi 0, %s74
      %s89 = sphi 0, %s75
      %s93 = sphi 0, %s93
      %s95 = sphi 0, %s93
      %s96 = sphi 0, %s95
      %s110 = sphi 0, %s96
      %s114 = sphi 0, %s114
      %s116 = sphi 0, %s114
      %s117 = sphi 0, %s116
      %s131 = sphi 0, %s117
      %s135 = sphi 0, %s135
      %s137 = sphi 0, %s135
      %s138 = sphi 0, %s137
      %s152 = sphi 0, %s138
      %s160 = sphi 0, %s162
      %s163 = sphi 0, %s160
      %s164 = sphi 0, %s163
      %s180 = sphi 0, %s164
    $region4: #{tpu_custom_call.1} parent=1 // loop_header_branch
      %27 = sbr.rel (%p25) target = $region8
    $region5: #{tpu_custom_call.1} parent=1 // loop_body
      %s29 = ssub.s32 %s24, 1
      %s30 = ssub.s32 %s24, 2
      %s37 = sadd.s32 1, %s32
      %p38 = scmp.ge.s32.totalorder %s37, 1
      %s39 = scalar_select %p38, 0, %s37
      %s40 = sadd.s32 1, %s31
      %s41 = scalar_select %p38, %s40, %s31
      %p42 = scmp.ge.s32.totalorder %s41, 2
      %s43 = scalar_select %p42, 0, %s41
      %s44 = sadd.s32 %s31, %s32
      %s45 = sadd.s32 %s43, %s39
      %s46 = ssub.s32 %s44, %s45
      %p47 = scmp.eq.s32.totalorder %s46, 0
      %s49 = sadd.s32 %s48, 1
      %s50 = scalar_select %p47, %s48, %s49
      %p53 = pneg %p47
      %p54 = scmp.eq.s32.totalorder %s24, 1
      %p55 = por %p53, %p54
      %p56 = scmp.ne.s32.totalorder %s48, %s51
      %p57 = scmp.eq.s32.totalorder %s24, 0
      %p58 = por %p56, %p57
      %p59 = scmp.ne.s32.totalorder %s48, %s51
      %p60 = scmp.eq.s32.totalorder %s29, 1
      %p61 = por %p59, %p60
      %p62 = scmp.ne.s32.totalorder %s51, %s52
      %p63 = scmp.eq.s32.totalorder %s29, 0
      %p64 = por %p62, %p63
      %p65 = scmp.ne.s32.totalorder %s51, %s52
      %p66 = scmp.eq.s32.totalorder %s30, 1
      %p67 = por %p65, %p66
      %p69 = scmp.ne.s32.totalorder %s52, %s68
      %p70 = scmp.eq.s32.totalorder %s30, 0
      %p71 = por %p69, %p70
      %s73 = sadd.s32 %s72, 1
      %p76 = scmp.eq.s32.totalorder %s24, 1
      %p77 = scmp.ne.s32.totalorder %s72, %s74
      %p78 = scmp.eq.s32.totalorder %s24, 0
      %p79 = por %p77, %p78
      %p80 = scmp.ne.s32.totalorder %s72, %s74
      %p81 = scmp.eq.s32.totalorder %s29, 1
      %p82 = por %p80, %p81
      %p83 = scmp.ne.s32.totalorder %s74, %s75
      %p84 = scmp.eq.s32.totalorder %s29, 0
      %p85 = por %p83, %p84
      %p86 = scmp.ne.s32.totalorder %s74, %s75
      %p87 = scmp.eq.s32.totalorder %s30, 1
      %p88 = por %p86, %p87
      %p90 = scmp.ne.s32.totalorder %s75, %s89
      %p91 = scmp.eq.s32.totalorder %s30, 0
      %p92 = por %p90, %p91
      %s94 = sadd.s32 %s93, 1
      %p97 = scmp.eq.s32.totalorder %s24, 1
      %p98 = scmp.ne.s32.totalorder %s93, %s95
      %p99 = scmp.eq.s32.totalorder %s24, 0
      %p100 = por %p98, %p99
      %p101 = scmp.ne.s32.totalorder %s93, %s95
      %p102 = scmp.eq.s32.totalorder %s29, 1
      %p103 = por %p101, %p102
      %p104 = scmp.ne.s32.totalorder %s95, %s96
      %p105 = scmp.eq.s32.totalorder %s29, 0
      %p106 = por %p104, %p105
      %p107 = scmp.ne.s32.totalorder %s95, %s96
      %p108 = scmp.eq.s32.totalorder %s30, 1
      %p109 = por %p107, %p108
      %p111 = scmp.ne.s32.totalorder %s96, %s110
      %p112 = scmp.eq.s32.totalorder %s30, 0
      %p113 = por %p111, %p112
      %s115 = sadd.s32 %s114, 1
      %p118 = scmp.eq.s32.totalorder %s24, 1
      %p119 = scmp.ne.s32.totalorder %s114, %s116
      %p120 = scmp.eq.s32.totalorder %s24, 0
      %p121 = por %p119, %p120
      %p122 = scmp.ne.s32.totalorder %s114, %s116
      %p123 = scmp.eq.s32.totalorder %s29, 1
      %p124 = por %p122, %p123
      %p125 = scmp.ne.s32.totalorder %s116, %s117
      %p126 = scmp.eq.s32.totalorder %s29, 0
      %p127 = por %p125, %p126
      %p128 = scmp.ne.s32.totalorder %s116, %s117
      %p129 = scmp.eq.s32.totalorder %s30, 1
      %p130 = por %p128, %p129
      %p132 = scmp.ne.s32.totalorder %s117, %s131
      %p133 = scmp.eq.s32.totalorder %s30, 0
      %p134 = por %p132, %p133
      %s136 = sadd.s32 %s135, 1
      %p139 = scmp.eq.s32.totalorder %s24, 1
      %p140 = scmp.ne.s32.totalorder %s135, %s137
      %p141 = scmp.eq.s32.totalorder %s24, 0
      %p142 = por %p140, %p141
      %p143 = scmp.ne.s32.totalorder %s135, %s137
      %p144 = scmp.eq.s32.totalorder %s29, 1
      %p145 = por %p143, %p144
      %p146 = scmp.ne.s32.totalorder %s137, %s138
      %p147 = scmp.eq.s32.totalorder %s29, 0
      %p148 = por %p146, %p147
      %p149 = scmp.ne.s32.totalorder %s137, %s138
      %p150 = scmp.eq.s32.totalorder %s30, 1
      %p151 = por %p149, %p150
      %p153 = scmp.ne.s32.totalorder %s138, %s152
      %p154 = scmp.eq.s32.totalorder %s30, 0
      %p155 = por %p153, %p154
      %s156 = sadd.s32 %s31, %s32
      %s157 = sadd.s32 %s43, %s39
      %s158 = ssub.s32 %s156, %s157
      %p159 = scmp.eq.s32.totalorder %s158, 0
      %s161 = sadd.s32 %s160, 1
      %s162 = scalar_select %p159, %s160, %s161
      %p165 = pneg %p159
      %p166 = scmp.eq.s32.totalorder %s24, 1
      %p167 = por %p165, %p166
      %p168 = scmp.ne.s32.totalorder %s160, %s163
      %p169 = scmp.eq.s32.totalorder %s24, 0
      %p170 = por %p168, %p169
      %p171 = scmp.ne.s32.totalorder %s160, %s163
      %p172 = scmp.eq.s32.totalorder %s29, 1
      %p173 = por %p171, %p172
      %p174 = scmp.ne.s32.totalorder %s163, %s164
      %p175 = scmp.eq.s32.totalorder %s29, 0
      %p176 = por %p174, %p175
      %p177 = scmp.ne.s32.totalorder %s163, %s164
      %p178 = scmp.eq.s32.totalorder %s30, 1
      %p179 = por %p177, %p178
      %p181 = scmp.ne.s32.totalorder %s164, %s180
      %p182 = scmp.eq.s32.totalorder %s30, 0
      %p183 = por %p181, %p182
      %p184 = scmp.le.s32.totalorder 1, %s24
      %p185 = scmp.lt.s32.totalorder %s24, 3
      %p186 = pnand %p184, %p185
      %p187 = pneg %p186
      // Predicated region
      $region9: #{tpu_custom_call.1} parent=5 // pred_check
        _
      $region10: #{tpu_custom_call.1} parent=5 // pred_check_branch
        %189 = sbr.rel (%p186) target = $region12
      $region11: #{tpu_custom_call.1} parent=5 // pred_region
        %s190 = ssub.s32 %s24, 1
        // Predicated region
        $region13: #{tpu_custom_call.1} parent=11 // pred_check
          %p191 = pneg %p85
        $region14: #{tpu_custom_call.1} parent=11 // pred_check_branch
          %193 = sbr.rel (%p191) target = $region16
        $region15: #{tpu_custom_call.1} parent=11 // pred_region
          _
        $region16: #{tpu_custom_call.1} parent=11 // pred_fallthru
          _
        // Predicated region
        $region17: #{tpu_custom_call.1} parent=11 // pred_check
          %p194 = pneg %p106
        $region18: #{tpu_custom_call.1} parent=11 // pred_check_branch
          %196 = sbr.rel (%p194) target = $region20
        $region19: #{tpu_custom_call.1} parent=11 // pred_region
          _
        $region20: #{tpu_custom_call.1} parent=11 // pred_fallthru
          _
        // Predicated region
        $region21: #{tpu_custom_call.1} parent=11 // pred_check
          %p197 = pneg %p127
        $region22: #{tpu_custom_call.1} parent=11 // pred_check_branch
          %199 = sbr.rel (%p197) target = $region24
        $region23: #{tpu_custom_call.1} parent=11 // pred_region
          _
        $region24: #{tpu_custom_call.1} parent=11 // pred_fallthru
          _
        // Predicated region
        $region25: #{tpu_custom_call.1} parent=11 // pred_check
          %p200 = pneg %p148
        $region26: #{tpu_custom_call.1} parent=11 // pred_check_branch
          %202 = sbr.rel (%p200) target = $region28
        $region27: #{tpu_custom_call.1} parent=11 // pred_region
          _
        $region28: #{tpu_custom_call.1} parent=11 // pred_fallthru
          _
      $region12: #{tpu_custom_call.1} parent=5 // pred_fallthru
        _
      %p203 = scmp.lt.s32.totalorder %s24, 2
      // Predicated region
      $region29: #{tpu_custom_call.1} parent=5 // pred_check
        %p204 = pneg %p203
      $region30: #{tpu_custom_call.1} parent=5 // pred_check_branch
        %206 = sbr.rel (%p204) target = $region32
      $region31: #{tpu_custom_call.1} parent=5 // pred_region
        // Predicated region
        $region33: #{tpu_custom_call.1} parent=31 // pred_check
          %p207 = pneg %p58
        $region34: #{tpu_custom_call.1} parent=31 // pred_check_branch
          %209 = sbr.rel (%p207) target = $region36
        $region35: #{tpu_custom_call.1} parent=31 // pred_region
          %s210 = sadd.s32 %s31, %s32
          %p211 = scmp.lt.s32.totalorder %s210, 1
          %s212 = scalar_select %p211, %s210, 1
          %s213 = smul.addr %s212, 8
          %s214 = scalar_lea.vmem %s1, %s213
          %s215 = sadd.s32 %s31, %s32
        $region36: #{tpu_custom_call.1} parent=31 // pred_fallthru
          _
      $region32: #{tpu_custom_call.1} parent=5 // pred_fallthru
        _
      %p216 = scmp.le.s32.totalorder 1, %s24
      %p217 = scmp.lt.s32.totalorder %s24, 3
      %p218 = pnand %p216, %p217
      %p219 = pneg %p218
      // Predicated region
      $region37: #{tpu_custom_call.1} parent=5 // pred_check
        _
      $region38: #{tpu_custom_call.1} parent=5 // pred_check_branch
        %221 = sbr.rel (%p218) target = $region40
      $region39: #{tpu_custom_call.1} parent=5 // pred_region
        %s222 = ssub.s32 %s24, 1
        %s223 = sadd.s32 %s33, %s34
        %p224 = scmp.lt.s32.totalorder %s223, 1
        %s225 = scalar_select %p224, %s223, 1
        %s226 = smul.addr %s225, 8
        %s227 = scalar_lea.vmem %s1, %s226
        %p228 = pneg %p64
        %p229 = pneg %p61
        %p230 = pneg %p85
        %p231 = pneg %p82
        %p232 = pneg %p106
        %p233 = pneg %p103
        %p234 = pneg %p127
        %p235 = pneg %p124
        %p236 = pneg %p148
        %p237 = pneg %p145
        %p238 = pneg %p176
        %p239 = pneg %p173
        %s240 = sand.u32 %s163, 1
        %s241 = scalar_lea.sflag [#allocation7], %s240
        %s242 = sand.u32 %s163, 1
        %s243 = smul.addr %s242, 8
        %s244 = scalar_lea.vmem [#allocation6], %s243
        %s245 = sadd.s32 %s33, %s34
        %p246 = scmp.lt.s32.totalorder %s245, 1
        %s247 = scalar_select %p246, %s245, 1
        %s248 = smul.addr %s247, 8
        %s249 = scalar_lea.vmem %s1, %s248
        %s250 = sadd.s32 %s33, %s34
        %s251 = sadd.s32 %s33, %s34
        %p252 = scmp.lt.s32.totalorder %s34, 0
        %s253 = ssub.s32 0, %s34
        %s254 = scalar_select %p252, %s253, %s34
        %s255 = sand.u32 %s254, 1
        %s256 = ssub.s32 0, %s255
        %s257 = scalar_select %p252, %s256, %s255
        %p258 = scmp.ne.s32.totalorder %s257, 0
        %p259 = scmp.lt.s32.totalorder %s257, 0
        %p260 = pnand %p259, %p258
        %p261 = pneg %p260
        %s262 = sadd.s32 %s257, 2
        %s263 = scalar_select %p261, %s262, %s257
        %s264 = sadd.s32 %s33, %s34
        %s265 = smul.u32 %s264, 8
        %p266 = scmp.eq.s32.totalorder %s34, 0
        // Predicated region
        $region41: #{tpu_custom_call.1} parent=39 // pred_check
          %p267 = pneg %p266
        $region42: #{tpu_custom_call.1} parent=39 // pred_check_branch
          %269 = sbr.rel (%p267) target = $region44
        $region43: #{tpu_custom_call.1} parent=39 // pred_region
          %s270 = sld [smem:[#allocation5 + %s265]]
          %s271 = scalar_lea.hbm %s2, %s270
          %s272 = smul.u32 %s263, 8
          %s273 = scalar_lea.vmem [#allocation2], %s272
          %s274 = scalar_lea.sflag [#allocation3], %s263
          // Predicated region
          $region45: #{tpu_custom_call.1} parent=43 // pred_check
            _
          $region46: #{tpu_custom_call.1} parent=43 // pred_check_branch
            %276 = sbr.rel target = $region48
          $region47: #{tpu_custom_call.1} parent=43 // pred_region
            %277 = sst [smem:[#allocation10]] [#allocation9]
            %278 = sst [smem:[#allocation11]] [#allocation8]
          $region48: #{tpu_custom_call.1} parent=43 // pred_fallthru
            _
          %280 = shalt.err (0)
          %s282 = sshll.u32 %s271, 4
          %s283 = int_to_ptr.hbm [resolvable:$true] %s282
          %s284 = sshll.u32 %s273, 4
          %s285 = int_to_ptr.vmem [resolvable:$true] %s284
          %287 = dma.hbm_to_vmem [thread:$0]  %s283, 16, %s285, %s274
          %s288 = sadd.s32 %s265, 1
          %s289 = sld [smem:[#allocation5 + %s288]]
          %s290 = scalar_lea.hbm %s2, %s289
          %s291 = scalar_lea.vmem %s273, 1 [#allocation2]
          // Predicated region
          $region49: #{tpu_custom_call.1} parent=43 // pred_check
            _
          $region50: #{tpu_custom_call.1} parent=43 // pred_check_branch
            %293 = sbr.rel target = $region52
          $region51: #{tpu_custom_call.1} parent=43 // pred_region
            %294 = sst [smem:[#allocation10]] [#allocation13]
            %295 = sst [smem:[#allocation11]] [#allocation12]
          $region52: #{tpu_custom_call.1} parent=43 // pred_fallthru
            _
          %297 = shalt.err (0)
          %s299 = sshll.u32 %s290, 4
          %s300 = int_to_ptr.hbm [resolvable:$true] %s299
          %s301 = sshll.u32 %s291, 4
          %s302 = int_to_ptr.vmem [resolvable:$true] %s301
          %304 = dma.hbm_to_vmem [thread:$0]  %s300, 16, %s302, %s274
          %s305 = sadd.s32 %s265, 2
          %s306 = sld [smem:[#allocation5 + %s305]]
          %s307 = scalar_lea.hbm %s2, %s306
          %s308 = scalar_lea.vmem %s273, 2 [#allocation2]
          // Predicated region
          $region53: #{tpu_custom_call.1} parent=43 // pred_check
            _
          $region54: #{tpu_custom_call.1} parent=43 // pred_check_branch
            %310 = sbr.rel target = $region56
          $region55: #{tpu_custom_call.1} parent=43 // pred_region
            %311 = sst [smem:[#allocation10]] [#allocation15]
            %312 = sst [smem:[#allocation11]] [#allocation14]
          $region56: #{tpu_custom_call.1} parent=43 // pred_fallthru
            _
          %314 = shalt.err (0)
          %s316 = sshll.u32 %s307, 4
          %s317 = int_to_ptr.hbm [resolvable:$true] %s316
          %s318 = sshll.u32 %s308, 4
          %s319 = int_to_ptr.vmem [resolvable:$true] %s318
          %321 = dma.hbm_to_vmem [thread:$0]  %s317, 16, %s319, %s274
          %s322 = sadd.s32 %s265, 3
          %s323 = sld [smem:[#allocation5 + %s322]]
          %s324 = scalar_lea.hbm %s2, %s323
          %s325 = scalar_lea.vmem %s273, 3 [#allocation2]
          // Predicated region
          $region57: #{tpu_custom_call.1} parent=43 // pred_check
            _
          $region58: #{tpu_custom_call.1} parent=43 // pred_check_branch
            %327 = sbr.rel target = $region60
          $region59: #{tpu_custom_call.1} parent=43 // pred_region
            %328 = sst [smem:[#allocation10]] [#allocation17]
            %329 = sst [smem:[#allocation11]] [#allocation16]
          $region60: #{tpu_custom_call.1} parent=43 // pred_fallthru
            _
          %331 = shalt.err (0)
          %s333 = sshll.u32 %s324, 4
          %s334 = int_to_ptr.hbm [resolvable:$true] %s333
          %s335 = sshll.u32 %s325, 4
          %s336 = int_to_ptr.vmem [resolvable:$true] %s335
          %338 = dma.hbm_to_vmem [thread:$0]  %s334, 16, %s336, %s274
          %s339 = sadd.s32 %s265, 4
          %s340 = sld [smem:[#allocation5 + %s339]]
          %s341 = scalar_lea.hbm %s2, %s340
          %s342 = scalar_lea.vmem %s273, 4 [#allocation2]
          // Predicated region
          $region61: #{tpu_custom_call.1} parent=43 // pred_check
            _
          $region62: #{tpu_custom_call.1} parent=43 // pred_check_branch
            %344 = sbr.rel target = $region64
          $region63: #{tpu_custom_call.1} parent=43 // pred_region
            %345 = sst [smem:[#allocation10]] [#allocation19]
            %346 = sst [smem:[#allocation11]] [#allocation18]
          $region64: #{tpu_custom_call.1} parent=43 // pred_fallthru
            _
          %348 = shalt.err (0)
          %s350 = sshll.u32 %s341, 4
          %s351 = int_to_ptr.hbm [resolvable:$true] %s350
          %s352 = sshll.u32 %s342, 4
          %s353 = int_to_ptr.vmem [resolvable:$true] %s352
          %355 = dma.hbm_to_vmem [thread:$0]  %s351, 16, %s353, %s274
          %s356 = sadd.s32 %s265, 5
          %s357 = sld [smem:[#allocation5 + %s356]]
          %s358 = scalar_lea.hbm %s2, %s357
          %s359 = scalar_lea.vmem %s273, 5 [#allocation2]
          // Predicated region
          $region65: #{tpu_custom_call.1} parent=43 // pred_check
            _
          $region66: #{tpu_custom_call.1} parent=43 // pred_check_branch
            %361 = sbr.rel target = $region68
          $region67: #{tpu_custom_call.1} parent=43 // pred_region
            %362 = sst [smem:[#allocation10]] [#allocation21]
            %363 = sst [smem:[#allocation11]] [#allocation20]
          $region68: #{tpu_custom_call.1} parent=43 // pred_fallthru
            _
          %365 = shalt.err (0)
          %s367 = sshll.u32 %s358, 4
          %s368 = int_to_ptr.hbm [resolvable:$true] %s367
          %s369 = sshll.u32 %s359, 4
          %s370 = int_to_ptr.vmem [resolvable:$true] %s369
          %372 = dma.hbm_to_vmem [thread:$0]  %s368, 16, %s370, %s274
          %s373 = sadd.s32 %s265, 6
          %s374 = sld [smem:[#allocation5 + %s373]]
          %s375 = scalar_lea.hbm %s2, %s374
          %s376 = scalar_lea.vmem %s273, 6 [#allocation2]
          // Predicated region
          $region69: #{tpu_custom_call.1} parent=43 // pred_check
            _
          $region70: #{tpu_custom_call.1} parent=43 // pred_check_branch
            %378 = sbr.rel target = $region72
          $region71: #{tpu_custom_call.1} parent=43 // pred_region
            %379 = sst [smem:[#allocation10]] [#allocation23]
            %380 = sst [smem:[#allocation11]] [#allocation22]
          $region72: #{tpu_custom_call.1} parent=43 // pred_fallthru
            _
          %382 = shalt.err (0)
          %s384 = sshll.u32 %s375, 4
          %s385 = int_to_ptr.hbm [resolvable:$true] %s384
          %s386 = sshll.u32 %s376, 4
          %s387 = int_to_ptr.vmem [resolvable:$true] %s386
          %389 = dma.hbm_to_vmem [thread:$0]  %s385, 16, %s387, %s274
          %s390 = sadd.s32 %s265, 7
          %s391 = sld [smem:[#allocation5 + %s390]]
          %s392 = scalar_lea.hbm %s2, %s391
          %s393 = scalar_lea.vmem %s273, 7 [#allocation2]
          // Predicated region
          $region73: #{tpu_custom_call.1} parent=43 // pred_check
            _
          $region74: #{tpu_custom_call.1} parent=43 // pred_check_branch
            %395 = sbr.rel target = $region76
          $region75: #{tpu_custom_call.1} parent=43 // pred_region
            %396 = sst [smem:[#allocation10]] [#allocation25]
            %397 = sst [smem:[#allocation11]] [#allocation24]
          $region76: #{tpu_custom_call.1} parent=43 // pred_fallthru
            _
          %399 = shalt.err (0)
          %s401 = sshll.u32 %s392, 4
          %s402 = int_to_ptr.hbm [resolvable:$true] %s401
          %s403 = sshll.u32 %s393, 4
          %s404 = int_to_ptr.vmem [resolvable:$true] %s403
          %406 = dma.hbm_to_vmem [thread:$0]  %s402, 16, %s404, %s274
        $region44: #{tpu_custom_call.1} parent=39 // pred_fallthru
          _
        %s407 = sadd.s32 %s34, 1
        %p408 = scmp.lt.s32.totalorder %s407, 1
        // Predicated region
        $region77: #{tpu_custom_call.1} parent=39 // pred_check
          %p409 = pneg %p408
        $region78: #{tpu_custom_call.1} parent=39 // pred_check_branch
          %411 = sbr.rel (%p409) target = $region80
        $region79: #{tpu_custom_call.1} parent=39 // pred_region
          %s412 = sadd.s32 %s265, 8
          %s413 = ssub.s32 1, %s263
          %s414 = sld [smem:[#allocation5 + %s412]]
          %s415 = scalar_lea.hbm %s2, %s414
          %s416 = smul.u32 %s413, 8
          %s417 = scalar_lea.vmem [#allocation2], %s416
          %s418 = scalar_lea.sflag [#allocation3], %s413
          // Predicated region
          $region81: #{tpu_custom_call.1} parent=79 // pred_check
            _
          $region82: #{tpu_custom_call.1} parent=79 // pred_check_branch
            %420 = sbr.rel target = $region84
          $region83: #{tpu_custom_call.1} parent=79 // pred_region
            %421 = sst [smem:[#allocation10]] [#allocation27]
            %422 = sst [smem:[#allocation11]] [#allocation26]
          $region84: #{tpu_custom_call.1} parent=79 // pred_fallthru
            _
          %424 = shalt.err (0)
          %s426 = sshll.u32 %s415, 4
          %s427 = int_to_ptr.hbm [resolvable:$true] %s426
          %s428 = sshll.u32 %s417, 4
          %s429 = int_to_ptr.vmem [resolvable:$true] %s428
          %431 = dma.hbm_to_vmem [thread:$0]  %s427, 16, %s429, %s418
          %s432 = sadd.s32 %s265, 9
          %s433 = sld [smem:[#allocation5 + %s432]]
          %s434 = scalar_lea.hbm %s2, %s433
          %s435 = scalar_lea.vmem %s417, 1 [#allocation2]
          // Predicated region
          $region85: #{tpu_custom_call.1} parent=79 // pred_check
            _
          $region86: #{tpu_custom_call.1} parent=79 // pred_check_branch
            %437 = sbr.rel target = $region88
          $region87: #{tpu_custom_call.1} parent=79 // pred_region
            %438 = sst [smem:[#allocation10]] [#allocation29]
            %439 = sst [smem:[#allocation11]] [#allocation28]
          $region88: #{tpu_custom_call.1} parent=79 // pred_fallthru
            _
          %441 = shalt.err (0)
          %s443 = sshll.u32 %s434, 4
          %s444 = int_to_ptr.hbm [resolvable:$true] %s443
          %s445 = sshll.u32 %s435, 4
          %s446 = int_to_ptr.vmem [resolvable:$true] %s445
          %448 = dma.hbm_to_vmem [thread:$0]  %s444, 16, %s446, %s418
          %s449 = sadd.s32 %s265, 10
          %s450 = sld [smem:[#allocation5 + %s449]]
          %s451 = scalar_lea.hbm %s2, %s450
          %s452 = scalar_lea.vmem %s417, 2 [#allocation2]
          // Predicated region
          $region89: #{tpu_custom_call.1} parent=79 // pred_check
            _
          $region90: #{tpu_custom_call.1} parent=79 // pred_check_branch
            %454 = sbr.rel target = $region92
          $region91: #{tpu_custom_call.1} parent=79 // pred_region
            %455 = sst [smem:[#allocation10]] [#allocation31]
            %456 = sst [smem:[#allocation11]] [#allocation30]
          $region92: #{tpu_custom_call.1} parent=79 // pred_fallthru
            _
          %458 = shalt.err (0)
          %s460 = sshll.u32 %s451, 4
          %s461 = int_to_ptr.hbm [resolvable:$true] %s460
          %s462 = sshll.u32 %s452, 4
          %s463 = int_to_ptr.vmem [resolvable:$true] %s462
          %465 = dma.hbm_to_vmem [thread:$0]  %s461, 16, %s463, %s418
          %s466 = sadd.s32 %s265, 11
          %s467 = sld [smem:[#allocation5 + %s466]]
          %s468 = scalar_lea.hbm %s2, %s467
          %s469 = scalar_lea.vmem %s417, 3 [#allocation2]
          // Predicated region
          $region93: #{tpu_custom_call.1} parent=79 // pred_check
            _
          $region94: #{tpu_custom_call.1} parent=79 // pred_check_branch
            %471 = sbr.rel target = $region96
          $region95: #{tpu_custom_call.1} parent=79 // pred_region
            %472 = sst [smem:[#allocation10]] [#allocation33]
            %473 = sst [smem:[#allocation11]] [#allocation32]
          $region96: #{tpu_custom_call.1} parent=79 // pred_fallthru
            _
          %475 = shalt.err (0)
          %s477 = sshll.u32 %s468, 4
          %s478 = int_to_ptr.hbm [resolvable:$true] %s477
          %s479 = sshll.u32 %s469, 4
          %s480 = int_to_ptr.vmem [resolvable:$true] %s479
          %482 = dma.hbm_to_vmem [thread:$0]  %s478, 16, %s480, %s418
          %s483 = sadd.s32 %s265, 12
          %s484 = sld [smem:[#allocation5 + %s483]]
          %s485 = scalar_lea.hbm %s2, %s484
          %s486 = scalar_lea.vmem %s417, 4 [#allocation2]
          // Predicated region
          $region97: #{tpu_custom_call.1} parent=79 // pred_check
            _
          $region98: #{tpu_custom_call.1} parent=79 // pred_check_branch
            %488 = sbr.rel target = $region100
          $region99: #{tpu_custom_call.1} parent=79 // pred_region
            %489 = sst [smem:[#allocation10]] [#allocation35]
            %490 = sst [smem:[#allocation11]] [#allocation34]
          $region100: #{tpu_custom_call.1} parent=79 // pred_fallthru
            _
          %492 = shalt.err (0)
          %s494 = sshll.u32 %s485, 4
          %s495 = int_to_ptr.hbm [resolvable:$true] %s494
          %s496 = sshll.u32 %s486, 4
          %s497 = int_to_ptr.vmem [resolvable:$true] %s496
          %499 = dma.hbm_to_vmem [thread:$0]  %s495, 16, %s497, %s418
          %s500 = sadd.s32 %s265, 13
          %s501 = sld [smem:[#allocation5 + %s500]]
          %s502 = scalar_lea.hbm %s2, %s501
          %s503 = scalar_lea.vmem %s417, 5 [#allocation2]
          // Predicated region
          $region101: #{tpu_custom_call.1} parent=79 // pred_check
            _
          $region102: #{tpu_custom_call.1} parent=79 // pred_check_branch
            %505 = sbr.rel target = $region104
          $region103: #{tpu_custom_call.1} parent=79 // pred_region
            %506 = sst [smem:[#allocation10]] [#allocation37]
            %507 = sst [smem:[#allocation11]] [#allocation36]
          $region104: #{tpu_custom_call.1} parent=79 // pred_fallthru
            _
          %509 = shalt.err (0)
          %s511 = sshll.u32 %s502, 4
          %s512 = int_to_ptr.hbm [resolvable:$true] %s511
          %s513 = sshll.u32 %s503, 4
          %s514 = int_to_ptr.vmem [resolvable:$true] %s513
          %516 = dma.hbm_to_vmem [thread:$0]  %s512, 16, %s514, %s418
          %s517 = sadd.s32 %s265, 14
          %s518 = sld [smem:[#allocation5 + %s517]]
          %s519 = scalar_lea.hbm %s2, %s518
          %s520 = scalar_lea.vmem %s417, 6 [#allocation2]
          // Predicated region
          $region105: #{tpu_custom_call.1} parent=79 // pred_check
            _
          $region106: #{tpu_custom_call.1} parent=79 // pred_check_branch
            %522 = sbr.rel target = $region108
          $region107: #{tpu_custom_call.1} parent=79 // pred_region
            %523 = sst [smem:[#allocation10]] [#allocation39]
            %524 = sst [smem:[#allocation11]] [#allocation38]
          $region108: #{tpu_custom_call.1} parent=79 // pred_fallthru
            _
          %526 = shalt.err (0)
          %s528 = sshll.u32 %s519, 4
          %s529 = int_to_ptr.hbm [resolvable:$true] %s528
          %s530 = sshll.u32 %s520, 4
          %s531 = int_to_ptr.vmem [resolvable:$true] %s530
          %533 = dma.hbm_to_vmem [thread:$0]  %s529, 16, %s531, %s418
          %s534 = sadd.s32 %s265, 15
          %s535 = sld [smem:[#allocation5 + %s534]]
          %s536 = scalar_lea.hbm %s2, %s535
          %s537 = scalar_lea.vmem %s417, 7 [#allocation2]
          // Predicated region
          $region109: #{tpu_custom_call.1} parent=79 // pred_check
            _
          $region110: #{tpu_custom_call.1} parent=79 // pred_check_branch
            %539 = sbr.rel target = $region112
          $region111: #{tpu_custom_call.1} parent=79 // pred_region
            %540 = sst [smem:[#allocation10]] [#allocation41]
            %541 = sst [smem:[#allocation11]] [#allocation40]
          $region112: #{tpu_custom_call.1} parent=79 // pred_fallthru
            _
          %543 = shalt.err (0)
          %s545 = sshll.u32 %s536, 4
          %s546 = int_to_ptr.hbm [resolvable:$true] %s545
          %s547 = sshll.u32 %s537, 4
          %s548 = int_to_ptr.vmem [resolvable:$true] %s547
          %550 = dma.hbm_to_vmem [thread:$0]  %s546, 16, %s548, %s418
        $region80: #{tpu_custom_call.1} parent=39 // pred_fallthru
          _
        %s551 = smul.u32 %s34, 8
        %s552 = scalar_lea.vmem %s4, %s551
        %v553 = vld [vmem:[%s552] sm:$0xff]
        %v554 = vld [vmem:[%s249] sm:$0xff]
        %v555 = vld [vmem:[%s3] sm:$0x1]
        %v556 = vld [vmem:[%s3 + $0x1] sm:$0x1]
        %v557 = vperm.slane %v555, 0
        %v558 = vadd.f32 %v553, %v557
        %vm559 = vcmp.eq.s32.totalorder %v554, 1
        %v560 = vsub.f32 %v556, %v555
        %v561 = vsel %vm559, 1, 0
        %562 = vset.pattern.permute.xlu0 0
        %563 = vperm.xlu0 %562, %v561
        %v564 = vpop.permute.xlu0 %563
        %vm565 = vcmp.eq.s32.totalorder %v564, 1
        %v566 = vperm.slane %v560, 0
        %v567 = vsel %vm565, %v566, 0.0
        %v568 = vadd.f32 %v558, %v567
        %s569 = smul.u32 %s263, 8
        %s570 = scalar_lea.vmem [#allocation2], %s569
        %s571 = scalar_lea.sflag [#allocation3], %s263
        %s572 = smul.u32 8, 1
        %s573 = sshll.u32 %s572, 4
        %574 = dma.done %s571, %s573
        %v575 = vld [vmem:[%s570] sm:$0xff]
        %v576 = vadd.f32 %v568, %v575
        %577 = vadd.xlane.f32.xlu0 %v576
        %v578 = vpop.xlane.xlu0 %577
        %v579 = vmul.f32 %v578, 0.03125
        %v580 = vsub.f32 %v576, %v579
        %v581 = vlaneseq
        %v582 = vand.u32 %v581, 127
        %vm583 = vcmp.lt.s32.totalorder %v582, 32
        %v584 = vsel %vm583, %v580, 0.0
        %v585 = vmul.f32 %v584, %v584
        %586 = vadd.xlane.f32.xlu0 %v585
        %v587 = vpop.xlane.xlu0 %586
        %v588 = vmul.f32 %v587, 0.03125
        %v589 = vadd.f32 %v588, 1e-12
        %v590 = vrsqrt.pop %v589
        %v591 = vmul.f32 %v590, %v589
        %v592 = vmul.f32 %v591, %v590
        %v593 = vmul.f32 0.5, %v592
        %v594 = vsub.f32 1.5, %v593
        %v595 = vmul.f32 %v590, %v594
        %vm596 = vweird.f32 %v589
        %vm597 = vweird.f32 %v590
        %vm598 = vmor %vm596, %vm597
        %v599 = vsel %vm598, %v590, %v595
        %v600 = vld [vmem:[%s5] sm:$0x1]
        %v602 = vperm.slane %v600, 0
        %v604 = vmul.f32 %v599, %v602
        %v605 = vmul.f32 %v584, %v604
        %v606 = vld [vmem:[%s6] sm:$0x1]
        %v608 = vperm.slane %v606, 0
        %v610 = vadd.f32 %v605, %v608
        %611 = vst [vmem:[%s244] sm:$0xff] %v610
        %s612 = sand.u32 %s163, 1
        %s613 = scalar_lea.sflag [#allocation7], %s612
        %s614 = sand.u32 %s163, 1
        %s615 = smul.addr %s614, 8
        %s616 = scalar_lea.vmem [#allocation6], %s615
        // Predicated region
        $region113: #{tpu_custom_call.1} parent=39 // pred_check
          %p617 = pneg %p173
        $region114: #{tpu_custom_call.1} parent=39 // pred_check_branch
          %619 = sbr.rel (%p617) target = $region116
        $region115: #{tpu_custom_call.1} parent=39 // pred_region
          %s620 = sadd.s32 %s33, %s34
          %622 = vsyncadd %s613, 0
          %s623 = smul.addr %s620, 8
          %s624 = scalar_lea.hbm %s7, %s623
          %s626 = sshll.u32 %s616, 4
          %s627 = int_to_ptr.vmem [resolvable:$true] %s626
          %s628 = sshll.u32 %s624, 4
          %s629 = int_to_ptr.hbm [resolvable:$true] %s628
          %631 = dma.vmem_to_hbm [thread:$0]  %s627, 128, %s629, %s613
        $region116: #{tpu_custom_call.1} parent=39 // pred_fallthru
          _
      $region40: #{tpu_custom_call.1} parent=5 // pred_fallthru
        _
      %p632 = scmp.le.s32.totalorder 2, %s24
      // Predicated region
      $region117: #{tpu_custom_call.1} parent=5 // pred_check
        %p633 = pneg %p632
      $region118: #{tpu_custom_call.1} parent=5 // pred_check_branch
        %635 = sbr.rel (%p633) target = $region120
      $region119: #{tpu_custom_call.1} parent=5 // pred_region
        %s636 = ssub.s32 %s24, 2
        // Predicated region
        $region121: #{tpu_custom_call.1} parent=119 // pred_check
          %p637 = pneg %p179
        $region122: #{tpu_custom_call.1} parent=119 // pred_check_branch
          %639 = sbr.rel (%p637) target = $region124
        $region123: #{tpu_custom_call.1} parent=119 // pred_region
          %s640 = sand.u32 %s164, 1
          %s641 = scalar_lea.sflag [#allocation7], %s640
          %s642 = sand.u32 %s164, 1
          %s643 = smul.addr %s642, 8
          %s644 = scalar_lea.vmem [#allocation6], %s643
          %646 = dma.done %s641, 128
        $region124: #{tpu_custom_call.1} parent=119 // pred_fallthru
          _
      $region120: #{tpu_custom_call.1} parent=5 // pred_fallthru
        _
    $region6: #{tpu_custom_call.1} parent=1 // loop_footer
      %s28 = sadd.s32 1, %s24
    $region7: #{tpu_custom_call.1} parent=1 // loop_footer_branch
      %23 = sbr.rel target = $region3
    $region8: #{tpu_custom_call.1} parent=1 // loop_exit
      _
    %647 = vsyncpa [#allocation7], 1
    %s648 = scalar_lea.sflag [#allocation7], 1
    %649 = vsyncpa %s648, 1
  %650 = vsyncmov [#allocation3]
  %s651 = vpop.sfrf %650
  %p652 = scmp.eq.s32.totalorder %s651, 0
  %p653 = pneg %p652
  %655 = shalt.err (%p653)
  %s656 = scalar_lea.sflag [#allocation3], 1
  %657 = vsyncmov %s656
  %s658 = vpop.sfrf %657
  %p659 = scmp.eq.s32.totalorder %s658, 0
  %p660 = pneg %p659
  %662 = shalt.err (%p660)

</llo_original>
